<compile_context>
chip_gen: v6e
topology: v6e:2x2x1
jax: 0.10.0
libtpu: 0.0.40
codegen_flags: <defaults>
</compile_context>

<pallas_src>
import jax
import jax.numpy as jnp
from jax.experimental import pallas as pl
from jax.experimental.pallas import tpu as pltpu

STATE_DIM = 16
HIDDEN_SIZES = (64, 64)
TILE_N = 1024  # rows per grid step; x tile bf16 lane-padded ~256 KiB/buffer


def _gnn_vf_kernel(x_ref, w1_ref, b1_ref, w2_ref, b2_ref, wf_ref, bf_ref, o_ref):
    # Hidden layer 1: bf16 operands on the MXU, f32 accumulation, tanh in f32.
    h1 = jnp.tanh(
        jnp.dot(x_ref[...], w1_ref[...], preferred_element_type=jnp.float32)
        + b1_ref[...]
    )
    # Hidden layer 2: feed MXU in bf16, accumulate in f32, tanh in f32.
    h2 = jnp.tanh(
        jnp.dot(h1.astype(jnp.bfloat16), w2_ref[...],
                preferred_element_type=jnp.float32)
        + b2_ref[...]
    )
    # Value head: 1-column matmul replaced by VPU multiply + XLU lane reduce.
    o_ref[...] = (
        jnp.sum(h2 * wf_ref[...], axis=-1, keepdims=True) + bf_ref[...]
    ).astype(o_ref.dtype)


def _fused_mlp(x_flat, params):
    """x_flat: (N, D) float32 -> (N, 1) float32 via a row-tiled Pallas kernel."""
    n, d = x_flat.shape
    w1, b1, w2, b2, wf, bf = params
    h1_dim, h2_dim = w1.shape[1], w2.shape[1]

    # bf16 matmul operands; biases / value-head row stay f32.
    x_bf = x_flat.astype(jnp.bfloat16)
    w1_bf = w1.astype(jnp.bfloat16)
    w2_bf = w2.astype(jnp.bfloat16)
    wf_row = wf.reshape(1, h2_dim).astype(jnp.float32)

    # Pad the row axis so every grid step sees a full TILE_N tile.
    n_pad = pl.cdiv(n, TILE_N) * TILE_N
    if n_pad != n:
        x_bf = jnp.pad(x_bf, ((0, n_pad - n), (0, 0)))

    def resident(shape):
        # Full-extent block that never changes -> stays resident in VMEM.
        return pl.BlockSpec(shape, lambda i: (0, 0))

    out = pl.pallas_call(
        _gnn_vf_kernel,
        out_shape=jax.ShapeDtypeStruct((n_pad, 1), jnp.float32),
        grid=(n_pad // TILE_N,),
        in_specs=[
            pl.BlockSpec((TILE_N, d), lambda i: (i, 0)),  # x row tile
            resident((d, h1_dim)),                        # W1
            resident((1, h1_dim)),                        # b1
            resident((h1_dim, h2_dim)),                   # W2
            resident((1, h2_dim)),                        # b2
            resident((1, h2_dim)),                        # Wf (as a row)
            resident((1, 1)),                             # bf
        ],
        out_specs=pl.BlockSpec((TILE_N, 1), lambda i: (i, 0)),
        compiler_params=pltpu.CompilerParams(
            dimension_semantics=("parallel",),     # shards tiles on v7x's 2 TCs
            vmem_limit_bytes=32 * 1024 * 1024,     # well under v7x's 64 MiB
        ),
    )(x_bf, w1_bf, b1, w2_bf, b2, wf_row, bf)
    return out[:n]


def init_params(key, state_dim=STATE_DIM, hidden_sizes=HIDDEN_SIZES):
    """Deterministic synthetic init (scaled normals)."""
    k1, k2, k3 = jax.random.split(key, 3)
    h1, h2 = hidden_sizes
    w1 = jax.random.normal(k1, (state_dim, h1), jnp.float32) / jnp.sqrt(state_dim)
    b1 = jnp.zeros((1, h1), jnp.float32)
    w2 = jax.random.normal(k2, (h1, h2), jnp.float32) / jnp.sqrt(h1)
    b2 = jnp.zeros((1, h2), jnp.float32)
    wf = jax.random.normal(k3, (h2, 1), jnp.float32) / jnp.sqrt(h2)
    bf = jnp.zeros((1, 1), jnp.float32)
    return (w1, b1, w2, b2, wf, bf)


def gnn_vf_net_forward(x, params):
    """
    Mirrors GNNVFNet.forward:
      - x of shape (B, R, D): per-rollout GNN features -> final linear
        -> values of shape (B, R, 1).
      - x of shape (B, D): treated as R == 1, rollout dim squeezed -> (B, 1).
    """
    if x.ndim == 3:
        b, r, d = x.shape
        out = _fused_mlp(x.reshape(b * r, d), params)
        return out.reshape(b, r, 1)
    elif x.ndim == 2:
        out = _fused_mlp(x, params)  # (B, 1); rollout dim already squeezed
        return out
    else:
        raise ValueError(f"unsupported input rank {x.ndim}")


def _reference(x, params):
    """Pure-JAX f32 reference of the same MLP."""
    w1, b1, w2, b2, wf, bf = params
    flat = x.reshape(-1, x.shape[-1]).astype(jnp.float32)
    h1 = jnp.tanh(flat @ w1 + b1)
    h2 = jnp.tanh(h1 @ w2 + b2)
    v = h2 @ wf + bf
    if x.ndim == 3:
        return v.reshape(x.shape[0], x.shape[1], 1)
    return v


if __name__ == "__main__":
    key = jax.random.PRNGKey(0)
    k_param, k_x3, k_x2 = jax.random.split(key, 3)

    params = init_params(k_param)

    # 3-D case: (batch=2, n_rollouts=8, state_dim=16) -> (2, 8, 1)
    x3 = jax.random.normal(k_x3, (2, 8, STATE_DIM), jnp.float32)
    v3 = jax.block_until_ready(gnn_vf_net_forward(x3, params))
    assert v3.shape == (2, 8, 1), v3.shape

    # 2-D case: (batch=2, state_dim=16) -> (2, 1)  (rollout dim squeezed)
    x2 = jax.random.normal(k_x2, (2, STATE_DIM), jnp.float32)
    v2 = jax.block_until_ready(gnn_vf_net_forward(x2, params))
    assert v2.shape == (2, 1), v2.shape

    # Correctness vs. pure-f32 reference (tolerance loosened for bf16 operands).
    ref3 = _reference(x3, params)
    ref2 = _reference(x2, params)
    assert jnp.allclose(v3, ref3, atol=5e-2, rtol=5e-2), jnp.max(jnp.abs(v3 - ref3))
    assert jnp.allclose(v2, ref2, atol=5e-2, rtol=5e-2), jnp.max(jnp.abs(v2 - ref2))

    print("KERNEL_OK")
</pallas_src>

<mosaic_0001>
module attributes {stable_mosaic.version = 11 : i64} {
  func.func @_gnn_vf_kernel(%arg0: i32, %arg1: memref<1024x16xbf16, #tpu.memory_space<vmem>>, %arg2: memref<16x64xbf16, #tpu.memory_space<vmem>>, %arg3: memref<1x64xf32, #tpu.memory_space<vmem>>, %arg4: memref<64x64xbf16, #tpu.memory_space<vmem>>, %arg5: memref<1x64xf32, #tpu.memory_space<vmem>>, %arg6: memref<1x64xf32, #tpu.memory_space<vmem>>, %arg7: memref<1x1xf32, #tpu.memory_space<vmem>>, %arg8: memref<1024x1xf32, #tpu.memory_space<vmem>>) attributes {dimension_semantics = [#tpu.dimension_semantics<parallel>], iteration_bounds = array<i64: 1>, scalar_prefetch = 0 : i64, scratch_operands = 0 : i64, tpu.core_type = #tpu.core_type<tc>, window_params = [{transform_indices = @transform_0, window_bounds = array<i64: 1024, 16>}, {pipeline_mode = #tpu.pipeline_mode<synchronous>, transform_indices = @transform_1, window_bounds = array<i64: 16, 64>}, {pipeline_mode = #tpu.pipeline_mode<synchronous>, transform_indices = @transform_2, window_bounds = array<i64: 1, 64>}, {pipeline_mode = #tpu.pipeline_mode<synchronous>, transform_indices = @transform_3, window_bounds = array<i64: 64, 64>}, {pipeline_mode = #tpu.pipeline_mode<synchronous>, transform_indices = @transform_4, window_bounds = array<i64: 1, 64>}, {pipeline_mode = #tpu.pipeline_mode<synchronous>, transform_indices = @transform_5, window_bounds = array<i64: 1, 64>}, {pipeline_mode = #tpu.pipeline_mode<synchronous>, transform_indices = @transform_6, window_bounds = array<i64: 1, 1>}, {transform_indices = @transform_7, window_bounds = array<i64: 1024, 1>}]} {
    %c0 = arith.constant 0 : index
    %c0_0 = arith.constant 0 : index
    %0 = vector.load %arg1[%c0, %c0_0] : memref<1024x16xbf16, #tpu.memory_space<vmem>>, vector<1024x16xbf16>
    %c0_1 = arith.constant 0 : index
    %c0_2 = arith.constant 0 : index
    %1 = vector.load %arg2[%c0_1, %c0_2] : memref<16x64xbf16, #tpu.memory_space<vmem>>, vector<16x64xbf16>
    %cst = arith.constant dense<0.000000e+00> : vector<1024x64xf32>
    %2 = tpu.matmul %0, %1, %cst {dimension_numbers = #tpu.dot_dimension_numbers<[1], [0], [0], [1], [0, 0, 1, 1], [], []>} : vector<1024x16xbf16>, vector<16x64xbf16>, vector<1024x64xf32> -> vector<1024x64xf32>
    %c0_3 = arith.constant 0 : index
    %c0_4 = arith.constant 0 : index
    %3 = vector.load %arg3[%c0_3, %c0_4] : memref<1x64xf32, #tpu.memory_space<vmem>>, vector<1x64xf32>
    %4 = vector.broadcast %3 : vector<1x64xf32> to vector<1024x64xf32>
    %5 = arith.addf %2, %4 : vector<1024x64xf32>
    %6 = math.tanh %5 : vector<1024x64xf32>
    %7 = arith.truncf %6 : vector<1024x64xf32> to vector<1024x64xbf16>
    %c0_5 = arith.constant 0 : index
    %c0_6 = arith.constant 0 : index
    %8 = vector.load %arg4[%c0_5, %c0_6] : memref<64x64xbf16, #tpu.memory_space<vmem>>, vector<64x64xbf16>
    %cst_7 = arith.constant dense<0.000000e+00> : vector<1024x64xf32>
    %9 = tpu.matmul %7, %8, %cst_7 {dimension_numbers = #tpu.dot_dimension_numbers<[1], [0], [0], [1], [0, 0, 1, 1], [], []>} : vector<1024x64xbf16>, vector<64x64xbf16>, vector<1024x64xf32> -> vector<1024x64xf32>
    %c0_8 = arith.constant 0 : index
    %c0_9 = arith.constant 0 : index
    %10 = vector.load %arg5[%c0_8, %c0_9] : memref<1x64xf32, #tpu.memory_space<vmem>>, vector<1x64xf32>
    %11 = vector.broadcast %10 : vector<1x64xf32> to vector<1024x64xf32>
    %12 = arith.addf %9, %11 : vector<1024x64xf32>
    %13 = math.tanh %12 : vector<1024x64xf32>
    %c0_10 = arith.constant 0 : index
    %c0_11 = arith.constant 0 : index
    %14 = vector.load %arg6[%c0_10, %c0_11] : memref<1x64xf32, #tpu.memory_space<vmem>>, vector<1x64xf32>
    %15 = vector.broadcast %14 : vector<1x64xf32> to vector<1024x64xf32>
    %16 = arith.mulf %13, %15 : vector<1024x64xf32>
    %cst_12 = arith.constant dense<0.000000e+00> : vector<1024xf32>
    %17 = vector.multi_reduction <add>, %16, %cst_12 [1] : vector<1024x64xf32> to vector<1024xf32>
    %18 = vector.shape_cast %17 : vector<1024xf32> to vector<1024x1xf32>
    %c0_13 = arith.constant 0 : index
    %c0_14 = arith.constant 0 : index
    %19 = vector.load %arg7[%c0_13, %c0_14] : memref<1x1xf32, #tpu.memory_space<vmem>>, vector<1x1xf32>
    %20 = vector.broadcast %19 : vector<1x1xf32> to vector<1024x1xf32>
    %21 = arith.addf %18, %20 : vector<1024x1xf32>
    %c0_15 = arith.constant 0 : index
    %c0_16 = arith.constant 0 : index
    %22 = vector.load %arg8[%c0_15, %c0_16] : memref<1024x1xf32, #tpu.memory_space<vmem>>, vector<1024x1xf32>
    tpu.vector_store %arg8[%c0_15, %c0_16], %21 {strides = array<i32>} : memref<1024x1xf32, #tpu.memory_space<vmem>>, vector<1024x1xf32>,
    return
  }
  func.func @transform_0(%arg0: i32) -> (i32, i32) {
    %c0_i32 = arith.constant 0 : i32
    %c0_i32_0 = arith.constant 0 : i32
    return %arg0, %c0_i32 : i32, i32
  }
  func.func @transform_1(%arg0: i32) -> (i32, i32) {
    %c0_i32 = arith.constant 0 : i32
    %c0_i32_0 = arith.constant 0 : i32
    %c0_i32_1 = arith.constant 0 : i32
    return %c0_i32, %c0_i32_0 : i32, i32
  }
  func.func @transform_2(%arg0: i32) -> (i32, i32) {
    %c0_i32 = arith.constant 0 : i32
    %c0_i32_0 = arith.constant 0 : i32
    %c0_i32_1 = arith.constant 0 : i32
    return %c0_i32, %c0_i32_0 : i32, i32
  }
  func.func @transform_3(%arg0: i32) -> (i32, i32) {
    %c0_i32 = arith.constant 0 : i32
    %c0_i32_0 = arith.constant 0 : i32
    %c0_i32_1 = arith.constant 0 : i32
    return %c0_i32, %c0_i32_0 : i32, i32
  }
  func.func @transform_4(%arg0: i32) -> (i32, i32) {
    %c0_i32 = arith.constant 0 : i32
    %c0_i32_0 = arith.constant 0 : i32
    %c0_i32_1 = arith.constant 0 : i32
    return %c0_i32, %c0_i32_0 : i32, i32
  }
  func.func @transform_5(%arg0: i32) -> (i32, i32) {
    %c0_i32 = arith.constant 0 : i32
    %c0_i32_0 = arith.constant 0 : i32
    %c0_i32_1 = arith.constant 0 : i32
    return %c0_i32, %c0_i32_0 : i32, i32
  }
  func.func @transform_6(%arg0: i32) -> (i32, i32) {
    %c0_i32 = arith.constant 0 : i32
    %c0_i32_0 = arith.constant 0 : i32
    %c0_i32_1 = arith.constant 0 : i32
    return %c0_i32, %c0_i32_0 : i32, i32
  }
  func.func @transform_7(%arg0: i32) -> (i32, i32) {
    %c0_i32 = arith.constant 0 : i32
    %c0_i32_0 = arith.constant 0 : i32
    return %arg0, %c0_i32 : i32, i32
  }
}

</mosaic_0001>

<llo_original>
// kernel: tpu_custom_call.1
$region0: #{tpu_custom_call.1}
  #allocation0 [shape = 'u32[]', space=smem, size = 0x4, offset = 0x4, fixed_abs, tag = 'smem constant byte address 0x4 - core index']
  #allocation1 [shape = 'u32[144,128]{1,0:T(1,128)}', space=vmem, size = 0x12000, scoped, tag = 'internal scratch']
  #allocation2 [shape = 'f32[1,1]{1,0:T(1,128)S(1)}', space=vmem, size = 0x200, scoped, tag = 'scoped memory for tpu_custom_call.1']
  %s0 = inlined_call_operand.vmem [shape: bf16[1024,16], index: 0, kind: input, shape index: {}]
  %s1 = inlined_call_operand.vmem [shape: bf16[16,64], index: 1, kind: input, shape index: {}]
  %s2 = inlined_call_operand.vmem [shape: f32[1,64], index: 2, kind: input, shape index: {}]
  %s3 = inlined_call_operand.vmem [shape: bf16[64,64], index: 3, kind: input, shape index: {}]
  %s4 = inlined_call_operand.vmem [shape: f32[1,64], index: 4, kind: input, shape index: {}]
  %s5 = inlined_call_operand.vmem [shape: f32[1,64], index: 5, kind: input, shape index: {}]
  %s6 = inlined_call_operand.<no memory space> [shape: f32[1,1], index: 6, kind: input, shape index: {}]
  %s7 = inlined_call_operand.vmem [shape: f32[1024,1], index: 7, kind: output, shape index: {}]
  %s8 = sld [smem:[#allocation0]]
  $region38: #{tpu_custom_call.1} parent=0
    _
  %s10 = ssub.s32 1, %s8
  %s11 = scalar_select 0, %s10, %s8
  %v12 = vstv %s6
  %13 = vst [vmem:[#allocation2] sm:$0x1] %v12
  // Predicated region
  $region2: #{tpu_custom_call.1} parent=0 // pred_check
    _
  $region3: #{tpu_custom_call.1} parent=0 // pred_check_branch
    %15 = sbr.rel (0) target = $region5
  $region4: #{tpu_custom_call.1} parent=0 // pred_region
    _
  $region5: #{tpu_custom_call.1} parent=0 // pred_fallthru
    _
  // Predicated region
  $region6: #{tpu_custom_call.1} parent=0 // pred_check
    _
  $region7: #{tpu_custom_call.1} parent=0 // pred_check_branch
    %17 = sbr.rel (0) target = $region9
  $region8: #{tpu_custom_call.1} parent=0 // pred_region
    _
  $region9: #{tpu_custom_call.1} parent=0 // pred_fallthru
    _
  // Predicated region
  $region10: #{tpu_custom_call.1} parent=0 // pred_check
    _
  $region11: #{tpu_custom_call.1} parent=0 // pred_check_branch
    %19 = sbr.rel (0) target = $region13
  $region12: #{tpu_custom_call.1} parent=0 // pred_region
    _
  $region13: #{tpu_custom_call.1} parent=0 // pred_fallthru
    _
  // Predicated region
  $region14: #{tpu_custom_call.1} parent=0 // pred_check
    _
  $region15: #{tpu_custom_call.1} parent=0 // pred_check_branch
    %21 = sbr.rel (0) target = $region17
  $region16: #{tpu_custom_call.1} parent=0 // pred_region
    _
  $region17: #{tpu_custom_call.1} parent=0 // pred_fallthru
    _
  // Predicated region
  $region18: #{tpu_custom_call.1} parent=0 // pred_check
    _
  $region19: #{tpu_custom_call.1} parent=0 // pred_check_branch
    %23 = sbr.rel (0) target = $region21
  $region20: #{tpu_custom_call.1} parent=0 // pred_region
    _
  $region21: #{tpu_custom_call.1} parent=0 // pred_fallthru
    _
  // Predicated region
  $region22: #{tpu_custom_call.1} parent=0 // pred_check
    _
  $region23: #{tpu_custom_call.1} parent=0 // pred_check_branch
    %25 = sbr.rel (0) target = $region25
  $region24: #{tpu_custom_call.1} parent=0 // pred_region
    _
  $region25: #{tpu_custom_call.1} parent=0 // pred_fallthru
    _
  // Predicated region
  $region26: #{tpu_custom_call.1} parent=0 // pred_check
    _
  $region27: #{tpu_custom_call.1} parent=0 // pred_check_branch
    %27 = sbr.rel (0) target = $region29
  $region28: #{tpu_custom_call.1} parent=0 // pred_region
    _
  $region29: #{tpu_custom_call.1} parent=0 // pred_fallthru
    _
  %v29 = vld [vmem:[%s0] sm:$0xf]
  %v30 = vld [vmem:[%s0 + $0x4] sm:$0xf]
  %v31 = vld [vmem:[%s0 + $0x8] sm:$0xf]
  %v32 = vld [vmem:[%s0 + $0xc] sm:$0xf]
  %v33 = vld [vmem:[%s0 + $0x10] sm:$0xf]
  %v34 = vld [vmem:[%s0 + $0x14] sm:$0xf]
  %v35 = vld [vmem:[%s0 + $0x18] sm:$0xf]
  %v36 = vld [vmem:[%s0 + $0x1c] sm:$0xf]
  %v37 = vld [vmem:[%s0 + $0x20] sm:$0xf]
  %v38 = vld [vmem:[%s0 + $0x24] sm:$0xf]
  %v39 = vld [vmem:[%s0 + $0x28] sm:$0xf]
  %v40 = vld [vmem:[%s0 + $0x2c] sm:$0xf]
  %v41 = vld [vmem:[%s0 + $0x30] sm:$0xf]
  %v42 = vld [vmem:[%s0 + $0x34] sm:$0xf]
  %v43 = vld [vmem:[%s0 + $0x38] sm:$0xf]
  %v44 = vld [vmem:[%s0 + $0x3c] sm:$0xf]
  %v45 = vld [vmem:[%s0 + $0x40] sm:$0xf]
  %v46 = vld [vmem:[%s0 + $0x44] sm:$0xf]
  %v47 = vld [vmem:[%s0 + $0x48] sm:$0xf]
  %v48 = vld [vmem:[%s0 + $0x4c] sm:$0xf]
  %v49 = vld [vmem:[%s0 + $0x50] sm:$0xf]
  %v50 = vld [vmem:[%s0 + $0x54] sm:$0xf]
  %v51 = vld [vmem:[%s0 + $0x58] sm:$0xf]
  %v52 = vld [vmem:[%s0 + $0x5c] sm:$0xf]
  %v53 = vld [vmem:[%s0 + $0x60] sm:$0xf]
  %v54 = vld [vmem:[%s0 + $0x64] sm:$0xf]
  %v55 = vld [vmem:[%s0 + $0x68] sm:$0xf]
  %v56 = vld [vmem:[%s0 + $0x6c] sm:$0xf]
  %v57 = vld [vmem:[%s0 + $0x70] sm:$0xf]
  %v58 = vld [vmem:[%s0 + $0x74] sm:$0xf]
  %v59 = vld [vmem:[%s0 + $0x78] sm:$0xf]
  %v60 = vld [vmem:[%s0 + $0x7c] sm:$0xf]
  %v61 = vld [vmem:[%s0 + $0x80] sm:$0xf]
  %v62 = vld [vmem:[%s0 + $0x84] sm:$0xf]
  %v63 = vld [vmem:[%s0 + $0x88] sm:$0xf]
  %v64 = vld [vmem:[%s0 + $0x8c] sm:$0xf]
  %v65 = vld [vmem:[%s0 + $0x90] sm:$0xf]
  %v66 = vld [vmem:[%s0 + $0x94] sm:$0xf]
  %v67 = vld [vmem:[%s0 + $0x98] sm:$0xf]
  %v68 = vld [vmem:[%s0 + $0x9c] sm:$0xf]
  %v69 = vld [vmem:[%s0 + $0xa0] sm:$0xf]
  %v70 = vld [vmem:[%s0 + $0xa4] sm:$0xf]
  %v71 = vld [vmem:[%s0 + $0xa8] sm:$0xf]
  %v72 = vld [vmem:[%s0 + $0xac] sm:$0xf]
  %v73 = vld [vmem:[%s0 + $0xb0] sm:$0xf]
  %v74 = vld [vmem:[%s0 + $0xb4] sm:$0xf]
  %v75 = vld [vmem:[%s0 + $0xb8] sm:$0xf]
  %v76 = vld [vmem:[%s0 + $0xbc] sm:$0xf]
  %v77 = vld [vmem:[%s0 + $0xc0] sm:$0xf]
  %v78 = vld [vmem:[%s0 + $0xc4] sm:$0xf]
  %v79 = vld [vmem:[%s0 + $0xc8] sm:$0xf]
  %v80 = vld [vmem:[%s0 + $0xcc] sm:$0xf]
  %v81 = vld [vmem:[%s0 + $0xd0] sm:$0xf]
  %v82 = vld [vmem:[%s0 + $0xd4] sm:$0xf]
  %v83 = vld [vmem:[%s0 + $0xd8] sm:$0xf]
  %v84 = vld [vmem:[%s0 + $0xdc] sm:$0xf]
  %v85 = vld [vmem:[%s0 + $0xe0] sm:$0xf]
  %v86 = vld [vmem:[%s0 + $0xe4] sm:$0xf]
  %v87 = vld [vmem:[%s0 + $0xe8] sm:$0xf]
  %v88 = vld [vmem:[%s0 + $0xec] sm:$0xf]
  %v89 = vld [vmem:[%s0 + $0xf0] sm:$0xf]
  %v90 = vld [vmem:[%s0 + $0xf4] sm:$0xf]
  %v91 = vld [vmem:[%s0 + $0xf8] sm:$0xf]
  %v92 = vld [vmem:[%s0 + $0xfc] sm:$0xf]
  %v93 = vld [vmem:[%s0 + $0x100] sm:$0xf]
  %v94 = vld [vmem:[%s0 + $0x104] sm:$0xf]
  %v95 = vld [vmem:[%s0 + $0x108] sm:$0xf]
  %v96 = vld [vmem:[%s0 + $0x10c] sm:$0xf]
  %v97 = vld [vmem:[%s0 + $0x110] sm:$0xf]
  %v98 = vld [vmem:[%s0 + $0x114] sm:$0xf]
  %v99 = vld [vmem:[%s0 + $0x118] sm:$0xf]
  %v100 = vld [vmem:[%s0 + $0x11c] sm:$0xf]
  %v101 = vld [vmem:[%s0 + $0x120] sm:$0xf]
  %v102 = vld [vmem:[%s0 + $0x124] sm:$0xf]
  %v103 = vld [vmem:[%s0 + $0x128] sm:$0xf]
  %v104 = vld [vmem:[%s0 + $0x12c] sm:$0xf]
  %v105 = vld [vmem:[%s0 + $0x130] sm:$0xf]
  %v106 = vld [vmem:[%s0 + $0x134] sm:$0xf]
  %v107 = vld [vmem:[%s0 + $0x138] sm:$0xf]
  %v108 = vld [vmem:[%s0 + $0x13c] sm:$0xf]
  %v109 = vld [vmem:[%s0 + $0x140] sm:$0xf]
  %v110 = vld [vmem:[%s0 + $0x144] sm:$0xf]
  %v111 = vld [vmem:[%s0 + $0x148] sm:$0xf]
  %v112 = vld [vmem:[%s0 + $0x14c] sm:$0xf]
  %v113 = vld [vmem:[%s0 + $0x150] sm:$0xf]
  %v114 = vld [vmem:[%s0 + $0x154] sm:$0xf]
  %v115 = vld [vmem:[%s0 + $0x158] sm:$0xf]
  %v116 = vld [vmem:[%s0 + $0x15c] sm:$0xf]
  %v117 = vld [vmem:[%s0 + $0x160] sm:$0xf]
  %v118 = vld [vmem:[%s0 + $0x164] sm:$0xf]
  %v119 = vld [vmem:[%s0 + $0x168] sm:$0xf]
  %v120 = vld [vmem:[%s0 + $0x16c] sm:$0xf]
  %v121 = vld [vmem:[%s0 + $0x170] sm:$0xf]
  %v122 = vld [vmem:[%s0 + $0x174] sm:$0xf]
  %v123 = vld [vmem:[%s0 + $0x178] sm:$0xf]
  %v124 = vld [vmem:[%s0 + $0x17c] sm:$0xf]
  %v125 = vld [vmem:[%s0 + $0x180] sm:$0xf]
  %v126 = vld [vmem:[%s0 + $0x184] sm:$0xf]
  %v127 = vld [vmem:[%s0 + $0x188] sm:$0xf]
  %v128 = vld [vmem:[%s0 + $0x18c] sm:$0xf]
  %v129 = vld [vmem:[%s0 + $0x190] sm:$0xf]
  %v130 = vld [vmem:[%s0 + $0x194] sm:$0xf]
  %v131 = vld [vmem:[%s0 + $0x198] sm:$0xf]
  %v132 = vld [vmem:[%s0 + $0x19c] sm:$0xf]
  %v133 = vld [vmem:[%s0 + $0x1a0] sm:$0xf]
  %v134 = vld [vmem:[%s0 + $0x1a4] sm:$0xf]
  %v135 = vld [vmem:[%s0 + $0x1a8] sm:$0xf]
  %v136 = vld [vmem:[%s0 + $0x1ac] sm:$0xf]
  %v137 = vld [vmem:[%s0 + $0x1b0] sm:$0xf]
  %v138 = vld [vmem:[%s0 + $0x1b4] sm:$0xf]
  %v139 = vld [vmem:[%s0 + $0x1b8] sm:$0xf]
  %v140 = vld [vmem:[%s0 + $0x1bc] sm:$0xf]
  %v141 = vld [vmem:[%s0 + $0x1c0] sm:$0xf]
  %v142 = vld [vmem:[%s0 + $0x1c4] sm:$0xf]
  %v143 = vld [vmem:[%s0 + $0x1c8] sm:$0xf]
  %v144 = vld [vmem:[%s0 + $0x1cc] sm:$0xf]
  %v145 = vld [vmem:[%s0 + $0x1d0] sm:$0xf]
  %v146 = vld [vmem:[%s0 + $0x1d4] sm:$0xf]
  %v147 = vld [vmem:[%s0 + $0x1d8] sm:$0xf]
  %v148 = vld [vmem:[%s0 + $0x1dc] sm:$0xf]
  %v149 = vld [vmem:[%s0 + $0x1e0] sm:$0xf]
  %v150 = vld [vmem:[%s0 + $0x1e4] sm:$0xf]
  %v151 = vld [vmem:[%s0 + $0x1e8] sm:$0xf]
  %v152 = vld [vmem:[%s0 + $0x1ec] sm:$0xf]
  %v153 = vld [vmem:[%s0 + $0x1f0] sm:$0xf]
  %v154 = vld [vmem:[%s0 + $0x1f4] sm:$0xf]
  %v155 = vld [vmem:[%s0 + $0x1f8] sm:$0xf]
  %v156 = vld [vmem:[%s0 + $0x1fc] sm:$0xf]
  %v157 = vld [vmem:[%s1] sm:$0xf]
  %v158 = vld [vmem:[%s1 + $0x4] sm:$0xf]
  %v159 = vld [vmem:[%s2] sm:$0x1]
  %v161 = vlaneseq
  %v162 = vshrl.u32 %v161, 7
  %v163 = vsub.s32 0, %v162
  %v164 = vrot.slane %v159, %v163
  %v294 = vunpack.c.l.b16 %v29
  %v295 = vunpack.c.l.b16 %v30
  %v296 = vunpack.c.l.b16 %v31
  %v297 = vunpack.c.l.b16 %v32
  %v298 = vunpack.c.l.b16 %v33
  %v299 = vunpack.c.l.b16 %v34
  %v300 = vunpack.c.l.b16 %v35
  %v301 = vunpack.c.l.b16 %v36
  %v302 = vunpack.c.l.b16 %v37
  %v303 = vunpack.c.l.b16 %v38
  %v304 = vunpack.c.l.b16 %v39
  %v305 = vunpack.c.l.b16 %v40
  %v306 = vunpack.c.l.b16 %v41
  %v307 = vunpack.c.l.b16 %v42
  %v308 = vunpack.c.l.b16 %v43
  %v309 = vunpack.c.l.b16 %v44
  %v310 = vunpack.c.l.b16 %v45
  %v311 = vunpack.c.l.b16 %v46
  %v312 = vunpack.c.l.b16 %v47
  %v313 = vunpack.c.l.b16 %v48
  %v314 = vunpack.c.l.b16 %v49
  %v315 = vunpack.c.l.b16 %v50
  %v316 = vunpack.c.l.b16 %v51
  %v317 = vunpack.c.l.b16 %v52
  %v318 = vunpack.c.l.b16 %v53
  %v319 = vunpack.c.l.b16 %v54
  %v320 = vunpack.c.l.b16 %v55
  %v321 = vunpack.c.l.b16 %v56
  %v322 = vunpack.c.l.b16 %v57
  %v323 = vunpack.c.l.b16 %v58
  %v324 = vunpack.c.l.b16 %v59
  %v325 = vunpack.c.l.b16 %v60
  %v326 = vunpack.c.l.b16 %v61
  %v327 = vunpack.c.l.b16 %v62
  %v328 = vunpack.c.l.b16 %v63
  %v329 = vunpack.c.l.b16 %v64
  %v330 = vunpack.c.l.b16 %v65
  %v331 = vunpack.c.l.b16 %v66
  %v332 = vunpack.c.l.b16 %v67
  %v333 = vunpack.c.l.b16 %v68
  %v334 = vunpack.c.l.b16 %v69
  %v335 = vunpack.c.l.b16 %v70
  %v336 = vunpack.c.l.b16 %v71
  %v337 = vunpack.c.l.b16 %v72
  %v338 = vunpack.c.l.b16 %v73
  %v339 = vunpack.c.l.b16 %v74
  %v340 = vunpack.c.l.b16 %v75
  %v341 = vunpack.c.l.b16 %v76
  %v342 = vunpack.c.l.b16 %v77
  %v343 = vunpack.c.l.b16 %v78
  %v344 = vunpack.c.l.b16 %v79
  %v345 = vunpack.c.l.b16 %v80
  %v346 = vunpack.c.l.b16 %v81
  %v347 = vunpack.c.l.b16 %v82
  %v348 = vunpack.c.l.b16 %v83
  %v349 = vunpack.c.l.b16 %v84
  %v350 = vunpack.c.l.b16 %v85
  %v351 = vunpack.c.l.b16 %v86
  %v352 = vunpack.c.l.b16 %v87
  %v353 = vunpack.c.l.b16 %v88
  %v354 = vunpack.c.l.b16 %v89
  %v355 = vunpack.c.l.b16 %v90
  %v356 = vunpack.c.l.b16 %v91
  %v357 = vunpack.c.l.b16 %v92
  %v358 = vunpack.c.l.b16 %v93
  %v359 = vunpack.c.l.b16 %v94
  %v360 = vunpack.c.l.b16 %v95
  %v361 = vunpack.c.l.b16 %v96
  %v362 = vunpack.c.l.b16 %v97
  %v363 = vunpack.c.l.b16 %v98
  %v364 = vunpack.c.l.b16 %v99
  %v365 = vunpack.c.l.b16 %v100
  %v366 = vunpack.c.l.b16 %v101
  %v367 = vunpack.c.l.b16 %v102
  %v368 = vunpack.c.l.b16 %v103
  %v369 = vunpack.c.l.b16 %v104
  %v370 = vunpack.c.l.b16 %v105
  %v371 = vunpack.c.l.b16 %v106
  %v372 = vunpack.c.l.b16 %v107
  %v373 = vunpack.c.l.b16 %v108
  %v374 = vunpack.c.l.b16 %v109
  %v375 = vunpack.c.l.b16 %v110
  %v376 = vunpack.c.l.b16 %v111
  %v377 = vunpack.c.l.b16 %v112
  %v378 = vunpack.c.l.b16 %v113
  %v379 = vunpack.c.l.b16 %v114
  %v380 = vunpack.c.l.b16 %v115
  %v381 = vunpack.c.l.b16 %v116
  %v382 = vunpack.c.l.b16 %v117
  %v383 = vunpack.c.l.b16 %v118
  %v384 = vunpack.c.l.b16 %v119
  %v385 = vunpack.c.l.b16 %v120
  %v386 = vunpack.c.l.b16 %v121
  %v387 = vunpack.c.l.b16 %v122
  %v388 = vunpack.c.l.b16 %v123
  %v389 = vunpack.c.l.b16 %v124
  %v390 = vunpack.c.l.b16 %v125
  %v391 = vunpack.c.l.b16 %v126
  %v392 = vunpack.c.l.b16 %v127
  %v393 = vunpack.c.l.b16 %v128
  %v394 = vunpack.c.l.b16 %v129
  %v395 = vunpack.c.l.b16 %v130
  %v396 = vunpack.c.l.b16 %v131
  %v397 = vunpack.c.l.b16 %v132
  %v398 = vunpack.c.l.b16 %v133
  %v399 = vunpack.c.l.b16 %v134
  %v400 = vunpack.c.l.b16 %v135
  %v401 = vunpack.c.l.b16 %v136
  %v402 = vunpack.c.l.b16 %v137
  %v403 = vunpack.c.l.b16 %v138
  %v404 = vunpack.c.l.b16 %v139
  %v405 = vunpack.c.l.b16 %v140
  %v406 = vunpack.c.l.b16 %v141
  %v407 = vunpack.c.l.b16 %v142
  %v408 = vunpack.c.l.b16 %v143
  %v409 = vunpack.c.l.b16 %v144
  %v410 = vunpack.c.l.b16 %v145
  %v411 = vunpack.c.l.b16 %v146
  %v412 = vunpack.c.l.b16 %v147
  %v413 = vunpack.c.l.b16 %v148
  %v414 = vunpack.c.l.b16 %v149
  %v415 = vunpack.c.l.b16 %v150
  %v416 = vunpack.c.l.b16 %v151
  %v417 = vunpack.c.l.b16 %v152
  %v418 = vunpack.c.l.b16 %v153
  %v419 = vunpack.c.l.b16 %v154
  %v420 = vunpack.c.l.b16 %v155
  %v421 = vunpack.c.l.b16 %v156
  %v422 = vpack.c.b16 %v295, %v294
  %v423 = vpack.c.b16 %v297, %v296
  %v424 = vpack.c.b16 %v299, %v298
  %v425 = vpack.c.b16 %v301, %v300
  %v426 = vpack.c.b16 %v303, %v302
  %v427 = vpack.c.b16 %v305, %v304
  %v428 = vpack.c.b16 %v307, %v306
  %v429 = vpack.c.b16 %v309, %v308
  %v430 = vpack.c.b16 %v311, %v310
  %v431 = vpack.c.b16 %v313, %v312
  %v432 = vpack.c.b16 %v315, %v314
  %v433 = vpack.c.b16 %v317, %v316
  %v434 = vpack.c.b16 %v319, %v318
  %v435 = vpack.c.b16 %v321, %v320
  %v436 = vpack.c.b16 %v323, %v322
  %v437 = vpack.c.b16 %v325, %v324
  %v438 = vpack.c.b16 %v327, %v326
  %v439 = vpack.c.b16 %v329, %v328
  %v440 = vpack.c.b16 %v331, %v330
  %v441 = vpack.c.b16 %v333, %v332
  %v442 = vpack.c.b16 %v335, %v334
  %v443 = vpack.c.b16 %v337, %v336
  %v444 = vpack.c.b16 %v339, %v338
  %v445 = vpack.c.b16 %v341, %v340
  %v446 = vpack.c.b16 %v343, %v342
  %v447 = vpack.c.b16 %v345, %v344
  %v448 = vpack.c.b16 %v347, %v346
  %v449 = vpack.c.b16 %v349, %v348
  %v450 = vpack.c.b16 %v351, %v350
  %v451 = vpack.c.b16 %v353, %v352
  %v452 = vpack.c.b16 %v355, %v354
  %v453 = vpack.c.b16 %v357, %v356
  %v454 = vpack.c.b16 %v359, %v358
  %v455 = vpack.c.b16 %v361, %v360
  %v456 = vpack.c.b16 %v363, %v362
  %v457 = vpack.c.b16 %v365, %v364
  %v458 = vpack.c.b16 %v367, %v366
  %v459 = vpack.c.b16 %v369, %v368
  %v460 = vpack.c.b16 %v371, %v370
  %v461 = vpack.c.b16 %v373, %v372
  %v462 = vpack.c.b16 %v375, %v374
  %v463 = vpack.c.b16 %v377, %v376
  %v464 = vpack.c.b16 %v379, %v378
  %v465 = vpack.c.b16 %v381, %v380
  %v466 = vpack.c.b16 %v383, %v382
  %v467 = vpack.c.b16 %v385, %v384
  %v468 = vpack.c.b16 %v387, %v386
  %v469 = vpack.c.b16 %v389, %v388
  %v470 = vpack.c.b16 %v391, %v390
  %v471 = vpack.c.b16 %v393, %v392
  %v472 = vpack.c.b16 %v395, %v394
  %v473 = vpack.c.b16 %v397, %v396
  %v474 = vpack.c.b16 %v399, %v398
  %v475 = vpack.c.b16 %v401, %v400
  %v476 = vpack.c.b16 %v403, %v402
  %v477 = vpack.c.b16 %v405, %v404
  %v478 = vpack.c.b16 %v407, %v406
  %v479 = vpack.c.b16 %v409, %v408
  %v480 = vpack.c.b16 %v411, %v410
  %v481 = vpack.c.b16 %v413, %v412
  %v482 = vpack.c.b16 %v415, %v414
  %v483 = vpack.c.b16 %v417, %v416
  %v484 = vpack.c.b16 %v419, %v418
  %v485 = vpack.c.b16 %v421, %v420
  %v488 = vunpack.c.l.b16 %v157
  %v489 = vunpack.c.l.b16 %v158
  %v490 = vpack.c.b16 %v489, %v488
  %vm492 = vcmask 130048
  %v494 = vsel %vm492, %v422, 0
  %v497 = vsel %vm492, %v423, 0
  %v500 = vsel %vm492, %v424, 0
  %v503 = vsel %vm492, %v425, 0
  %v506 = vsel %vm492, %v426, 0
  %v509 = vsel %vm492, %v427, 0
  %v512 = vsel %vm492, %v428, 0
  %v515 = vsel %vm492, %v429, 0
  %v518 = vsel %vm492, %v430, 0
  %v521 = vsel %vm492, %v431, 0
  %v524 = vsel %vm492, %v432, 0
  %v527 = vsel %vm492, %v433, 0
  %v530 = vsel %vm492, %v434, 0
  %v533 = vsel %vm492, %v435, 0
  %v536 = vsel %vm492, %v436, 0
  %v539 = vsel %vm492, %v437, 0
  %v542 = vsel %vm492, %v438, 0
  %v545 = vsel %vm492, %v439, 0
  %v548 = vsel %vm492, %v440, 0
  %v551 = vsel %vm492, %v441, 0
  %v554 = vsel %vm492, %v442, 0
  %v557 = vsel %vm492, %v443, 0
  %v560 = vsel %vm492, %v444, 0
  %v563 = vsel %vm492, %v445, 0
  %v566 = vsel %vm492, %v446, 0
  %v569 = vsel %vm492, %v447, 0
  %v572 = vsel %vm492, %v448, 0
  %v575 = vsel %vm492, %v449, 0
  %v578 = vsel %vm492, %v450, 0
  %v581 = vsel %vm492, %v451, 0
  %v584 = vsel %vm492, %v452, 0
  %v587 = vsel %vm492, %v453, 0
  %v590 = vsel %vm492, %v454, 0
  %v593 = vsel %vm492, %v455, 0
  %v596 = vsel %vm492, %v456, 0
  %v599 = vsel %vm492, %v457, 0
  %v602 = vsel %vm492, %v458, 0
  %v605 = vsel %vm492, %v459, 0
  %v608 = vsel %vm492, %v460, 0
  %v611 = vsel %vm492, %v461, 0
  %v614 = vsel %vm492, %v462, 0
  %v617 = vsel %vm492, %v463, 0
  %v620 = vsel %vm492, %v464, 0
  %v623 = vsel %vm492, %v465, 0
  %v626 = vsel %vm492, %v466, 0
  %v629 = vsel %vm492, %v467, 0
  %v632 = vsel %vm492, %v468, 0
  %v635 = vsel %vm492, %v469, 0
  %v638 = vsel %vm492, %v470, 0
  %v641 = vsel %vm492, %v471, 0
  %v644 = vsel %vm492, %v472, 0
  %v647 = vsel %vm492, %v473, 0
  %v650 = vsel %vm492, %v474, 0
  %v653 = vsel %vm492, %v475, 0
  %v656 = vsel %vm492, %v476, 0
  %v659 = vsel %vm492, %v477, 0
  %v662 = vsel %vm492, %v478, 0
  %v665 = vsel %vm492, %v479, 0
  %v668 = vsel %vm492, %v480, 0
  %v671 = vsel %vm492, %v481, 0
  %v674 = vsel %vm492, %v482, 0
  %v677 = vsel %vm492, %v483, 0
  %v680 = vsel %vm492, %v484, 0
  %v683 = vsel %vm492, %v485, 0
  %685 = vmatprep.subr.bf16.mxu0 0
  %686 = vmatpush1.bf16.msra.mxu0 0
  %687 = vmatprep.subr.bf16.mxu0 0
  %688 = vmatpush1.bf16.msra.mxu0 0
  %689 = vmatprep.subr.bf16.mxu0 0
  %690 = vmatpush1.bf16.msra.mxu0 0
  %691 = vmatprep.subr.bf16.mxu0 0
  %692 = vmatpush1.bf16.msra.mxu0 0
  %693 = vmatprep.subr.bf16.mxu0 0
  %694 = vmatpush1.bf16.msra.mxu0 0
  %695 = vmatprep.subr.bf16.mxu0 0
  %696 = vmatpush1.bf16.msra.mxu0 0
  %697 = vmatprep.subr.bf16.mxu0 0
  %698 = vmatpush1.bf16.msra.mxu0 0
  %699 = vmatprep.subr.bf16.mxu0 0
  %700 = vmatpush1.bf16.msra.mxu0 %v490
  %701 = vmatprep.subr.bf16.mxu0 0
  %702 = vmatpush2.bf16.msra.mxu0 0
  %703 = vmatprep.subr.bf16.mxu0 0
  %704 = vmatpush2.bf16.msra.mxu0 0
  %705 = vmatprep.subr.bf16.mxu0 0
  %706 = vmatpush2.bf16.msra.mxu0 0
  %707 = vmatprep.subr.bf16.mxu0 0
  %708 = vmatpush2.bf16.msra.mxu0 0
  %709 = vmatprep.subr.bf16.mxu0 0
  %710 = vmatpush2.bf16.msra.mxu0 0
  %711 = vmatprep.subr.bf16.mxu0 0
  %712 = vmatpush2.bf16.msra.mxu0 0
  %713 = vmatprep.subr.bf16.mxu0 0
  %714 = vmatpush2.bf16.msra.mxu0 0
  %715 = vmatprep.subr.bf16.mxu0 0
  %716 = vmatpush2.bf16.msra.mxu0 0
  %717 = vmatprep.mubr.bf16.mxu0 0
  %718 = vmatmul.mubr.bf16.gmra.mxu0 %v494
  %v719 = vpop.f32.mrf.mxu0
  %v720 = vadd.f32 %v164, %v719
  %v721 = vpop.f32.mrf.mxu0
  %v722 = vpop.f32.mrf.mxu0
  %v723 = vadd.f32 %v164, %v722
  %v724 = vpop.f32.mrf.mxu0
  %725 = vmatprep.mubr.bf16.mxu0 0
  %726 = vmatmul.mubr.bf16.gmra.mxu0 %v497
  %v727 = vpop.f32.mrf.mxu0
  %v728 = vadd.f32 %v164, %v727
  %v729 = vpop.f32.mrf.mxu0
  %v730 = vpop.f32.mrf.mxu0
  %v731 = vadd.f32 %v164, %v730
  %v732 = vpop.f32.mrf.mxu0
  %733 = vmatprep.mubr.bf16.mxu0 0
  %734 = vmatmul.mubr.bf16.gmra.mxu0 %v500
  %v735 = vpop.f32.mrf.mxu0
  %v736 = vadd.f32 %v164, %v735
  %v737 = vpop.f32.mrf.mxu0
  %v738 = vpop.f32.mrf.mxu0
  %v739 = vadd.f32 %v164, %v738
  %v740 = vpop.f32.mrf.mxu0
  %741 = vmatprep.mubr.bf16.mxu0 0
  %742 = vmatmul.mubr.bf16.gmra.mxu0 %v503
  %v743 = vpop.f32.mrf.mxu0
  %v744 = vadd.f32 %v164, %v743
  %v745 = vpop.f32.mrf.mxu0
  %v746 = vpop.f32.mrf.mxu0
  %v747 = vadd.f32 %v164, %v746
  %v748 = vpop.f32.mrf.mxu0
  %749 = vmatprep.mubr.bf16.mxu0 0
  %750 = vmatmul.mubr.bf16.gmra.mxu0 %v506
  %v751 = vpop.f32.mrf.mxu0
  %v752 = vadd.f32 %v164, %v751
  %v753 = vpop.f32.mrf.mxu0
  %v754 = vpop.f32.mrf.mxu0
  %v755 = vadd.f32 %v164, %v754
  %v756 = vpop.f32.mrf.mxu0
  %757 = vmatprep.mubr.bf16.mxu0 0
  %758 = vmatmul.mubr.bf16.gmra.mxu0 %v509
  %v759 = vpop.f32.mrf.mxu0
  %v760 = vadd.f32 %v164, %v759
  %v761 = vpop.f32.mrf.mxu0
  %v762 = vpop.f32.mrf.mxu0
  %v763 = vadd.f32 %v164, %v762
  %v764 = vpop.f32.mrf.mxu0
  %765 = vmatprep.mubr.bf16.mxu0 0
  %766 = vmatmul.mubr.bf16.gmra.mxu0 %v512
  %v767 = vpop.f32.mrf.mxu0
  %v768 = vadd.f32 %v164, %v767
  %v769 = vpop.f32.mrf.mxu0
  %v770 = vpop.f32.mrf.mxu0
  %v771 = vadd.f32 %v164, %v770
  %v772 = vpop.f32.mrf.mxu0
  %773 = vmatprep.mubr.bf16.mxu0 0
  %774 = vmatmul.mubr.bf16.gmra.mxu0 %v515
  %v775 = vpop.f32.mrf.mxu0
  %v776 = vadd.f32 %v164, %v775
  %v777 = vpop.f32.mrf.mxu0
  %v778 = vpop.f32.mrf.mxu0
  %v779 = vadd.f32 %v164, %v778
  %v780 = vpop.f32.mrf.mxu0
  %781 = vmatprep.mubr.bf16.mxu0 0
  %782 = vmatmul.mubr.bf16.gmra.mxu0 %v518
  %v783 = vpop.f32.mrf.mxu0
  %v784 = vadd.f32 %v164, %v783
  %v785 = vpop.f32.mrf.mxu0
  %v786 = vpop.f32.mrf.mxu0
  %v787 = vadd.f32 %v164, %v786
  %v788 = vpop.f32.mrf.mxu0
  %789 = vmatprep.mubr.bf16.mxu0 0
  %790 = vmatmul.mubr.bf16.gmra.mxu0 %v521
  %v791 = vpop.f32.mrf.mxu0
  %v792 = vadd.f32 %v164, %v791
  %v793 = vpop.f32.mrf.mxu0
  %v794 = vpop.f32.mrf.mxu0
  %v795 = vadd.f32 %v164, %v794
  %v796 = vpop.f32.mrf.mxu0
  %797 = vmatprep.mubr.bf16.mxu0 0
  %798 = vmatmul.mubr.bf16.gmra.mxu0 %v524
  %v799 = vpop.f32.mrf.mxu0
  %v800 = vadd.f32 %v164, %v799
  %v801 = vpop.f32.mrf.mxu0
  %v802 = vpop.f32.mrf.mxu0
  %v803 = vadd.f32 %v164, %v802
  %v804 = vpop.f32.mrf.mxu0
  %805 = vmatprep.mubr.bf16.mxu0 0
  %806 = vmatmul.mubr.bf16.gmra.mxu0 %v527
  %v807 = vpop.f32.mrf.mxu0
  %v808 = vadd.f32 %v164, %v807
  %v809 = vpop.f32.mrf.mxu0
  %v810 = vpop.f32.mrf.mxu0
  %v811 = vadd.f32 %v164, %v810
  %v812 = vpop.f32.mrf.mxu0
  %813 = vmatprep.mubr.bf16.mxu0 0
  %814 = vmatmul.mubr.bf16.gmra.mxu0 %v530
  %v815 = vpop.f32.mrf.mxu0
  %v816 = vadd.f32 %v164, %v815
  %v817 = vpop.f32.mrf.mxu0
  %v818 = vpop.f32.mrf.mxu0
  %v819 = vadd.f32 %v164, %v818
  %v820 = vpop.f32.mrf.mxu0
  %821 = vmatprep.mubr.bf16.mxu0 0
  %822 = vmatmul.mubr.bf16.gmra.mxu0 %v533
  %v823 = vpop.f32.mrf.mxu0
  %v824 = vadd.f32 %v164, %v823
  %v825 = vpop.f32.mrf.mxu0
  %v826 = vpop.f32.mrf.mxu0
  %v827 = vadd.f32 %v164, %v826
  %v828 = vpop.f32.mrf.mxu0
  %829 = vmatprep.mubr.bf16.mxu0 0
  %830 = vmatmul.mubr.bf16.gmra.mxu0 %v536
  %v831 = vpop.f32.mrf.mxu0
  %v832 = vadd.f32 %v164, %v831
  %v833 = vpop.f32.mrf.mxu0
  %v834 = vpop.f32.mrf.mxu0
  %v835 = vadd.f32 %v164, %v834
  %v836 = vpop.f32.mrf.mxu0
  %837 = vmatprep.mubr.bf16.mxu0 0
  %838 = vmatmul.mubr.bf16.gmra.mxu0 %v539
  %v839 = vpop.f32.mrf.mxu0
  %v840 = vadd.f32 %v164, %v839
  %v841 = vpop.f32.mrf.mxu0
  %v842 = vpop.f32.mrf.mxu0
  %v843 = vadd.f32 %v164, %v842
  %v844 = vpop.f32.mrf.mxu0
  %845 = vmatprep.mubr.bf16.mxu0 0
  %846 = vmatmul.mubr.bf16.gmra.mxu0 %v542
  %v847 = vpop.f32.mrf.mxu0
  %v848 = vadd.f32 %v164, %v847
  %v849 = vpop.f32.mrf.mxu0
  %v850 = vpop.f32.mrf.mxu0
  %v851 = vadd.f32 %v164, %v850
  %v852 = vpop.f32.mrf.mxu0
  %853 = vmatprep.mubr.bf16.mxu0 0
  %854 = vmatmul.mubr.bf16.gmra.mxu0 %v545
  %v855 = vpop.f32.mrf.mxu0
  %v856 = vadd.f32 %v164, %v855
  %v857 = vpop.f32.mrf.mxu0
  %v858 = vpop.f32.mrf.mxu0
  %v859 = vadd.f32 %v164, %v858
  %v860 = vpop.f32.mrf.mxu0
  %861 = vmatprep.mubr.bf16.mxu0 0
  %862 = vmatmul.mubr.bf16.gmra.mxu0 %v548
  %v863 = vpop.f32.mrf.mxu0
  %v864 = vadd.f32 %v164, %v863
  %v865 = vpop.f32.mrf.mxu0
  %v866 = vpop.f32.mrf.mxu0
  %v867 = vadd.f32 %v164, %v866
  %v868 = vpop.f32.mrf.mxu0
  %869 = vmatprep.mubr.bf16.mxu0 0
  %870 = vmatmul.mubr.bf16.gmra.mxu0 %v551
  %v871 = vpop.f32.mrf.mxu0
  %v872 = vadd.f32 %v164, %v871
  %v873 = vpop.f32.mrf.mxu0
  %v874 = vpop.f32.mrf.mxu0
  %v875 = vadd.f32 %v164, %v874
  %v876 = vpop.f32.mrf.mxu0
  %877 = vmatprep.mubr.bf16.mxu0 0
  %878 = vmatmul.mubr.bf16.gmra.mxu0 %v554
  %v879 = vpop.f32.mrf.mxu0
  %v880 = vadd.f32 %v164, %v879
  %v881 = vpop.f32.mrf.mxu0
  %v882 = vpop.f32.mrf.mxu0
  %v883 = vadd.f32 %v164, %v882
  %v884 = vpop.f32.mrf.mxu0
  %885 = vmatprep.mubr.bf16.mxu0 0
  %886 = vmatmul.mubr.bf16.gmra.mxu0 %v557
  %v887 = vpop.f32.mrf.mxu0
  %v888 = vadd.f32 %v164, %v887
  %v889 = vpop.f32.mrf.mxu0
  %v890 = vpop.f32.mrf.mxu0
  %v891 = vadd.f32 %v164, %v890
  %v892 = vpop.f32.mrf.mxu0
  %893 = vmatprep.mubr.bf16.mxu0 0
  %894 = vmatmul.mubr.bf16.gmra.mxu0 %v560
  %v895 = vpop.f32.mrf.mxu0
  %v896 = vadd.f32 %v164, %v895
  %v897 = vpop.f32.mrf.mxu0
  %v898 = vpop.f32.mrf.mxu0
  %v899 = vadd.f32 %v164, %v898
  %v900 = vpop.f32.mrf.mxu0
  %901 = vmatprep.mubr.bf16.mxu0 0
  %902 = vmatmul.mubr.bf16.gmra.mxu0 %v563
  %v903 = vpop.f32.mrf.mxu0
  %v904 = vadd.f32 %v164, %v903
  %v905 = vpop.f32.mrf.mxu0
  %v906 = vpop.f32.mrf.mxu0
  %v907 = vadd.f32 %v164, %v906
  %v908 = vpop.f32.mrf.mxu0
  %909 = vmatprep.mubr.bf16.mxu0 0
  %910 = vmatmul.mubr.bf16.gmra.mxu0 %v566
  %v911 = vpop.f32.mrf.mxu0
  %v912 = vadd.f32 %v164, %v911
  %v913 = vpop.f32.mrf.mxu0
  %v914 = vpop.f32.mrf.mxu0
  %v915 = vadd.f32 %v164, %v914
  %v916 = vpop.f32.mrf.mxu0
  %917 = vmatprep.mubr.bf16.mxu0 0
  %918 = vmatmul.mubr.bf16.gmra.mxu0 %v569
  %v919 = vpop.f32.mrf.mxu0
  %v920 = vadd.f32 %v164, %v919
  %v921 = vpop.f32.mrf.mxu0
  %v922 = vpop.f32.mrf.mxu0
  %v923 = vadd.f32 %v164, %v922
  %v924 = vpop.f32.mrf.mxu0
  %925 = vmatprep.mubr.bf16.mxu0 0
  %926 = vmatmul.mubr.bf16.gmra.mxu0 %v572
  %v927 = vpop.f32.mrf.mxu0
  %v928 = vadd.f32 %v164, %v927
  %v929 = vpop.f32.mrf.mxu0
  %v930 = vpop.f32.mrf.mxu0
  %v931 = vadd.f32 %v164, %v930
  %v932 = vpop.f32.mrf.mxu0
  %933 = vmatprep.mubr.bf16.mxu0 0
  %934 = vmatmul.mubr.bf16.gmra.mxu0 %v575
  %v935 = vpop.f32.mrf.mxu0
  %v936 = vadd.f32 %v164, %v935
  %v937 = vpop.f32.mrf.mxu0
  %v938 = vpop.f32.mrf.mxu0
  %v939 = vadd.f32 %v164, %v938
  %v940 = vpop.f32.mrf.mxu0
  %941 = vmatprep.mubr.bf16.mxu0 0
  %942 = vmatmul.mubr.bf16.gmra.mxu0 %v578
  %v943 = vpop.f32.mrf.mxu0
  %v944 = vadd.f32 %v164, %v943
  %v945 = vpop.f32.mrf.mxu0
  %v946 = vpop.f32.mrf.mxu0
  %v947 = vadd.f32 %v164, %v946
  %v948 = vpop.f32.mrf.mxu0
  %949 = vmatprep.mubr.bf16.mxu0 0
  %950 = vmatmul.mubr.bf16.gmra.mxu0 %v581
  %v951 = vpop.f32.mrf.mxu0
  %v952 = vadd.f32 %v164, %v951
  %v953 = vpop.f32.mrf.mxu0
  %v954 = vpop.f32.mrf.mxu0
  %v955 = vadd.f32 %v164, %v954
  %v956 = vpop.f32.mrf.mxu0
  %957 = vmatprep.mubr.bf16.mxu0 0
  %958 = vmatmul.mubr.bf16.gmra.mxu0 %v584
  %v959 = vpop.f32.mrf.mxu0
  %v960 = vadd.f32 %v164, %v959
  %v961 = vpop.f32.mrf.mxu0
  %v962 = vpop.f32.mrf.mxu0
  %v963 = vadd.f32 %v164, %v962
  %v964 = vpop.f32.mrf.mxu0
  %965 = vmatprep.mubr.bf16.mxu0 0
  %966 = vmatmul.mubr.bf16.gmra.mxu0 %v587
  %v967 = vpop.f32.mrf.mxu0
  %v968 = vadd.f32 %v164, %v967
  %v969 = vpop.f32.mrf.mxu0
  %v970 = vpop.f32.mrf.mxu0
  %v971 = vadd.f32 %v164, %v970
  %v972 = vpop.f32.mrf.mxu0
  %973 = vmatprep.mubr.bf16.mxu0 0
  %974 = vmatmul.mubr.bf16.gmra.mxu0 %v590
  %v975 = vpop.f32.mrf.mxu0
  %v976 = vadd.f32 %v164, %v975
  %v977 = vpop.f32.mrf.mxu0
  %v978 = vpop.f32.mrf.mxu0
  %v979 = vadd.f32 %v164, %v978
  %v980 = vpop.f32.mrf.mxu0
  %981 = vmatprep.mubr.bf16.mxu0 0
  %982 = vmatmul.mubr.bf16.gmra.mxu0 %v593
  %v983 = vpop.f32.mrf.mxu0
  %v984 = vadd.f32 %v164, %v983
  %v985 = vpop.f32.mrf.mxu0
  %v986 = vpop.f32.mrf.mxu0
  %v987 = vadd.f32 %v164, %v986
  %v988 = vpop.f32.mrf.mxu0
  %989 = vmatprep.mubr.bf16.mxu0 0
  %990 = vmatmul.mubr.bf16.gmra.mxu0 %v596
  %v991 = vpop.f32.mrf.mxu0
  %v992 = vadd.f32 %v164, %v991
  %v993 = vpop.f32.mrf.mxu0
  %v994 = vpop.f32.mrf.mxu0
  %v995 = vadd.f32 %v164, %v994
  %v996 = vpop.f32.mrf.mxu0
  %997 = vmatprep.mubr.bf16.mxu0 0
  %998 = vmatmul.mubr.bf16.gmra.mxu0 %v599
  %v999 = vpop.f32.mrf.mxu0
  %v1000 = vadd.f32 %v164, %v999
  %v1001 = vpop.f32.mrf.mxu0
  %v1002 = vpop.f32.mrf.mxu0
  %v1003 = vadd.f32 %v164, %v1002
  %v1004 = vpop.f32.mrf.mxu0
  %1005 = vmatprep.mubr.bf16.mxu0 0
  %1006 = vmatmul.mubr.bf16.gmra.mxu0 %v602
  %v1007 = vpop.f32.mrf.mxu0
  %v1008 = vadd.f32 %v164, %v1007
  %v1009 = vpop.f32.mrf.mxu0
  %v1010 = vpop.f32.mrf.mxu0
  %v1011 = vadd.f32 %v164, %v1010
  %v1012 = vpop.f32.mrf.mxu0
  %1013 = vmatprep.mubr.bf16.mxu0 0
  %1014 = vmatmul.mubr.bf16.gmra.mxu0 %v605
  %v1015 = vpop.f32.mrf.mxu0
  %v1016 = vadd.f32 %v164, %v1015
  %v1017 = vpop.f32.mrf.mxu0
  %v1018 = vpop.f32.mrf.mxu0
  %v1019 = vadd.f32 %v164, %v1018
  %v1020 = vpop.f32.mrf.mxu0
  %1021 = vmatprep.mubr.bf16.mxu0 0
  %1022 = vmatmul.mubr.bf16.gmra.mxu0 %v608
  %v1023 = vpop.f32.mrf.mxu0
  %v1024 = vadd.f32 %v164, %v1023
  %v1025 = vpop.f32.mrf.mxu0
  %v1026 = vpop.f32.mrf.mxu0
  %v1027 = vadd.f32 %v164, %v1026
  %v1028 = vpop.f32.mrf.mxu0
  %1029 = vmatprep.mubr.bf16.mxu0 0
  %1030 = vmatmul.mubr.bf16.gmra.mxu0 %v611
  %v1031 = vpop.f32.mrf.mxu0
  %v1032 = vadd.f32 %v164, %v1031
  %v1033 = vpop.f32.mrf.mxu0
  %v1034 = vpop.f32.mrf.mxu0
  %v1035 = vadd.f32 %v164, %v1034
  %v1036 = vpop.f32.mrf.mxu0
  %1037 = vmatprep.mubr.bf16.mxu0 0
  %1038 = vmatmul.mubr.bf16.gmra.mxu0 %v614
  %v1039 = vpop.f32.mrf.mxu0
  %v1040 = vadd.f32 %v164, %v1039
  %v1041 = vpop.f32.mrf.mxu0
  %v1042 = vpop.f32.mrf.mxu0
  %v1043 = vadd.f32 %v164, %v1042
  %v1044 = vpop.f32.mrf.mxu0
  %1045 = vmatprep.mubr.bf16.mxu0 0
  %1046 = vmatmul.mubr.bf16.gmra.mxu0 %v617
  %v1047 = vpop.f32.mrf.mxu0
  %v1048 = vadd.f32 %v164, %v1047
  %v1049 = vpop.f32.mrf.mxu0
  %v1050 = vpop.f32.mrf.mxu0
  %v1051 = vadd.f32 %v164, %v1050
  %v1052 = vpop.f32.mrf.mxu0
  %1053 = vmatprep.mubr.bf16.mxu0 0
  %1054 = vmatmul.mubr.bf16.gmra.mxu0 %v620
  %v1055 = vpop.f32.mrf.mxu0
  %v1056 = vadd.f32 %v164, %v1055
  %v1057 = vpop.f32.mrf.mxu0
  %v1058 = vpop.f32.mrf.mxu0
  %v1059 = vadd.f32 %v164, %v1058
  %v1060 = vpop.f32.mrf.mxu0
  %1061 = vmatprep.mubr.bf16.mxu0 0
  %1062 = vmatmul.mubr.bf16.gmra.mxu0 %v623
  %v1063 = vpop.f32.mrf.mxu0
  %v1064 = vadd.f32 %v164, %v1063
  %v1065 = vpop.f32.mrf.mxu0
  %v1066 = vpop.f32.mrf.mxu0
  %v1067 = vadd.f32 %v164, %v1066
  %v1068 = vpop.f32.mrf.mxu0
  %1069 = vmatprep.mubr.bf16.mxu0 0
  %1070 = vmatmul.mubr.bf16.gmra.mxu0 %v626
  %v1071 = vpop.f32.mrf.mxu0
  %v1072 = vadd.f32 %v164, %v1071
  %v1073 = vpop.f32.mrf.mxu0
  %v1074 = vpop.f32.mrf.mxu0
  %v1075 = vadd.f32 %v164, %v1074
  %v1076 = vpop.f32.mrf.mxu0
  %1077 = vmatprep.mubr.bf16.mxu0 0
  %1078 = vmatmul.mubr.bf16.gmra.mxu0 %v629
  %v1079 = vpop.f32.mrf.mxu0
  %v1080 = vadd.f32 %v164, %v1079
  %v1081 = vpop.f32.mrf.mxu0
  %v1082 = vpop.f32.mrf.mxu0
  %v1083 = vadd.f32 %v164, %v1082
  %v1084 = vpop.f32.mrf.mxu0
  %1085 = vmatprep.mubr.bf16.mxu0 0
  %1086 = vmatmul.mubr.bf16.gmra.mxu0 %v632
  %v1087 = vpop.f32.mrf.mxu0
  %v1088 = vadd.f32 %v164, %v1087
  %v1089 = vpop.f32.mrf.mxu0
  %v1090 = vpop.f32.mrf.mxu0
  %v1091 = vadd.f32 %v164, %v1090
  %v1092 = vpop.f32.mrf.mxu0
  %1093 = vmatprep.mubr.bf16.mxu0 0
  %1094 = vmatmul.mubr.bf16.gmra.mxu0 %v635
  %v1095 = vpop.f32.mrf.mxu0
  %v1096 = vadd.f32 %v164, %v1095
  %v1097 = vpop.f32.mrf.mxu0
  %v1098 = vpop.f32.mrf.mxu0
  %v1099 = vadd.f32 %v164, %v1098
  %v1100 = vpop.f32.mrf.mxu0
  %1101 = vmatprep.mubr.bf16.mxu0 0
  %1102 = vmatmul.mubr.bf16.gmra.mxu0 %v638
  %v1103 = vpop.f32.mrf.mxu0
  %v1104 = vadd.f32 %v164, %v1103
  %v1105 = vpop.f32.mrf.mxu0
  %v1106 = vpop.f32.mrf.mxu0
  %v1107 = vadd.f32 %v164, %v1106
  %v1108 = vpop.f32.mrf.mxu0
  %1109 = vmatprep.mubr.bf16.mxu0 0
  %1110 = vmatmul.mubr.bf16.gmra.mxu0 %v641
  %v1111 = vpop.f32.mrf.mxu0
  %v1112 = vadd.f32 %v164, %v1111
  %v1113 = vpop.f32.mrf.mxu0
  %v1114 = vpop.f32.mrf.mxu0
  %v1115 = vadd.f32 %v164, %v1114
  %v1116 = vpop.f32.mrf.mxu0
  %1117 = vmatprep.mubr.bf16.mxu0 0
  %1118 = vmatmul.mubr.bf16.gmra.mxu0 %v644
  %v1119 = vpop.f32.mrf.mxu0
  %v1120 = vadd.f32 %v164, %v1119
  %v1121 = vpop.f32.mrf.mxu0
  %v1122 = vpop.f32.mrf.mxu0
  %v1123 = vadd.f32 %v164, %v1122
  %v1124 = vpop.f32.mrf.mxu0
  %1125 = vmatprep.mubr.bf16.mxu0 0
  %1126 = vmatmul.mubr.bf16.gmra.mxu0 %v647
  %v1127 = vpop.f32.mrf.mxu0
  %v1128 = vadd.f32 %v164, %v1127
  %v1129 = vpop.f32.mrf.mxu0
  %v1130 = vpop.f32.mrf.mxu0
  %v1131 = vadd.f32 %v164, %v1130
  %v1132 = vpop.f32.mrf.mxu0
  %1133 = vmatprep.mubr.bf16.mxu0 0
  %1134 = vmatmul.mubr.bf16.gmra.mxu0 %v650
  %v1135 = vpop.f32.mrf.mxu0
  %v1136 = vadd.f32 %v164, %v1135
  %v1137 = vpop.f32.mrf.mxu0
  %v1138 = vpop.f32.mrf.mxu0
  %v1139 = vadd.f32 %v164, %v1138
  %v1140 = vpop.f32.mrf.mxu0
  %1141 = vmatprep.mubr.bf16.mxu0 0
  %1142 = vmatmul.mubr.bf16.gmra.mxu0 %v653
  %v1143 = vpop.f32.mrf.mxu0
  %v1144 = vadd.f32 %v164, %v1143
  %v1145 = vpop.f32.mrf.mxu0
  %v1146 = vpop.f32.mrf.mxu0
  %v1147 = vadd.f32 %v164, %v1146
  %v1148 = vpop.f32.mrf.mxu0
  %1149 = vmatprep.mubr.bf16.mxu0 0
  %1150 = vmatmul.mubr.bf16.gmra.mxu0 %v656
  %v1151 = vpop.f32.mrf.mxu0
  %v1152 = vadd.f32 %v164, %v1151
  %v1153 = vpop.f32.mrf.mxu0
  %v1154 = vpop.f32.mrf.mxu0
  %v1155 = vadd.f32 %v164, %v1154
  %v1156 = vpop.f32.mrf.mxu0
  %1157 = vmatprep.mubr.bf16.mxu0 0
  %1158 = vmatmul.mubr.bf16.gmra.mxu0 %v659
  %v1159 = vpop.f32.mrf.mxu0
  %v1160 = vadd.f32 %v164, %v1159
  %v1161 = vpop.f32.mrf.mxu0
  %v1162 = vpop.f32.mrf.mxu0
  %v1163 = vadd.f32 %v164, %v1162
  %v1164 = vpop.f32.mrf.mxu0
  %1165 = vmatprep.mubr.bf16.mxu0 0
  %1166 = vmatmul.mubr.bf16.gmra.mxu0 %v662
  %v1167 = vpop.f32.mrf.mxu0
  %v1168 = vadd.f32 %v164, %v1167
  %v1169 = vpop.f32.mrf.mxu0
  %v1170 = vpop.f32.mrf.mxu0
  %v1171 = vadd.f32 %v164, %v1170
  %v1172 = vpop.f32.mrf.mxu0
  %1173 = vmatprep.mubr.bf16.mxu0 0
  %1174 = vmatmul.mubr.bf16.gmra.mxu0 %v665
  %v1175 = vpop.f32.mrf.mxu0
  %v1176 = vadd.f32 %v164, %v1175
  %v1177 = vpop.f32.mrf.mxu0
  %v1178 = vpop.f32.mrf.mxu0
  %v1179 = vadd.f32 %v164, %v1178
  %v1180 = vpop.f32.mrf.mxu0
  %1181 = vmatprep.mubr.bf16.mxu0 0
  %1182 = vmatmul.mubr.bf16.gmra.mxu0 %v668
  %v1183 = vpop.f32.mrf.mxu0
  %v1184 = vadd.f32 %v164, %v1183
  %v1185 = vpop.f32.mrf.mxu0
  %v1186 = vpop.f32.mrf.mxu0
  %v1187 = vadd.f32 %v164, %v1186
  %v1188 = vpop.f32.mrf.mxu0
  %1189 = vmatprep.mubr.bf16.mxu0 0
  %1190 = vmatmul.mubr.bf16.gmra.mxu0 %v671
  %v1191 = vpop.f32.mrf.mxu0
  %v1192 = vadd.f32 %v164, %v1191
  %v1193 = vpop.f32.mrf.mxu0
  %v1194 = vpop.f32.mrf.mxu0
  %v1195 = vadd.f32 %v164, %v1194
  %v1196 = vpop.f32.mrf.mxu0
  %1197 = vmatprep.mubr.bf16.mxu0 0
  %1198 = vmatmul.mubr.bf16.gmra.mxu0 %v674
  %v1199 = vpop.f32.mrf.mxu0
  %v1200 = vadd.f32 %v164, %v1199
  %v1201 = vpop.f32.mrf.mxu0
  %v1202 = vpop.f32.mrf.mxu0
  %v1203 = vadd.f32 %v164, %v1202
  %v1204 = vpop.f32.mrf.mxu0
  %1205 = vmatprep.mubr.bf16.mxu0 0
  %1206 = vmatmul.mubr.bf16.gmra.mxu0 %v677
  %v1207 = vpop.f32.mrf.mxu0
  %v1208 = vadd.f32 %v164, %v1207
  %v1209 = vpop.f32.mrf.mxu0
  %v1210 = vpop.f32.mrf.mxu0
  %v1211 = vadd.f32 %v164, %v1210
  %v1212 = vpop.f32.mrf.mxu0
  %1213 = vmatprep.mubr.bf16.mxu0 0
  %1214 = vmatmul.mubr.bf16.gmra.mxu0 %v680
  %v1215 = vpop.f32.mrf.mxu0
  %v1216 = vadd.f32 %v164, %v1215
  %v1217 = vpop.f32.mrf.mxu0
  %v1218 = vpop.f32.mrf.mxu0
  %v1219 = vadd.f32 %v164, %v1218
  %v1220 = vpop.f32.mrf.mxu0
  %1221 = vmatprep.mubr.bf16.mxu0 0
  %1222 = vmatmul.mubr.bf16.gmra.mxu0 %v683
  %v1223 = vpop.f32.mrf.mxu0
  %v1224 = vadd.f32 %v164, %v1223
  %v1225 = vpop.f32.mrf.mxu0
  %v1226 = vpop.f32.mrf.mxu0
  %v1227 = vadd.f32 %v164, %v1226
  %v1228 = vpop.f32.mrf.mxu0
  %1229 = vdwg.mxu0
  %v1230 = vtanh.pop %v720
  %v1231 = vtanh.pop %v723
  %v1232 = vtanh.pop %v728
  %v1233 = vtanh.pop %v731
  %v1234 = vtanh.pop %v736
  %v1235 = vtanh.pop %v739
  %v1236 = vtanh.pop %v744
  %v1237 = vtanh.pop %v747
  %v1238 = vtanh.pop %v752
  %v1239 = vtanh.pop %v755
  %v1240 = vtanh.pop %v760
  %v1241 = vtanh.pop %v763
  %v1242 = vtanh.pop %v768
  %v1243 = vtanh.pop %v771
  %v1244 = vtanh.pop %v776
  %v1245 = vtanh.pop %v779
  %v1246 = vtanh.pop %v784
  %v1247 = vtanh.pop %v787
  %v1248 = vtanh.pop %v792
  %v1249 = vtanh.pop %v795
  %v1250 = vtanh.pop %v800
  %v1251 = vtanh.pop %v803
  %v1252 = vtanh.pop %v808
  %v1253 = vtanh.pop %v811
  %v1254 = vtanh.pop %v816
  %v1255 = vtanh.pop %v819
  %v1256 = vtanh.pop %v824
  %v1257 = vtanh.pop %v827
  %v1258 = vtanh.pop %v832
  %v1259 = vtanh.pop %v835
  %v1260 = vtanh.pop %v840
  %v1261 = vtanh.pop %v843
  %v1262 = vtanh.pop %v848
  %v1263 = vtanh.pop %v851
  %v1264 = vtanh.pop %v856
  %v1265 = vtanh.pop %v859
  %v1266 = vtanh.pop %v864
  %v1267 = vtanh.pop %v867
  %v1268 = vtanh.pop %v872
  %v1269 = vtanh.pop %v875
  %v1270 = vtanh.pop %v880
  %v1271 = vtanh.pop %v883
  %v1272 = vtanh.pop %v888
  %v1273 = vtanh.pop %v891
  %v1274 = vtanh.pop %v896
  %v1275 = vtanh.pop %v899
  %v1276 = vtanh.pop %v904
  %v1277 = vtanh.pop %v907
  %v1278 = vtanh.pop %v912
  %v1279 = vtanh.pop %v915
  %v1280 = vtanh.pop %v920
  %v1281 = vtanh.pop %v923
  %v1282 = vtanh.pop %v928
  %v1283 = vtanh.pop %v931
  %v1284 = vtanh.pop %v936
  %v1285 = vtanh.pop %v939
  %v1286 = vtanh.pop %v944
  %v1287 = vtanh.pop %v947
  %v1288 = vtanh.pop %v952
  %v1289 = vtanh.pop %v955
  %v1290 = vtanh.pop %v960
  %v1291 = vtanh.pop %v963
  %v1292 = vtanh.pop %v968
  %v1293 = vtanh.pop %v971
  %v1294 = vtanh.pop %v976
  %v1295 = vtanh.pop %v979
  %v1296 = vtanh.pop %v984
  %v1297 = vtanh.pop %v987
  %v1298 = vtanh.pop %v992
  %v1299 = vtanh.pop %v995
  %v1300 = vtanh.pop %v1000
  %v1301 = vtanh.pop %v1003
  %v1302 = vtanh.pop %v1008
  %v1303 = vtanh.pop %v1011
  %v1304 = vtanh.pop %v1016
  %v1305 = vtanh.pop %v1019
  %v1306 = vtanh.pop %v1024
  %v1307 = vtanh.pop %v1027
  %v1308 = vtanh.pop %v1032
  %v1309 = vtanh.pop %v1035
  %v1310 = vtanh.pop %v1040
  %v1311 = vtanh.pop %v1043
  %v1312 = vtanh.pop %v1048
  %v1313 = vtanh.pop %v1051
  %v1314 = vtanh.pop %v1056
  %v1315 = vtanh.pop %v1059
  %v1316 = vtanh.pop %v1064
  %v1317 = vtanh.pop %v1067
  %v1318 = vtanh.pop %v1072
  %v1319 = vtanh.pop %v1075
  %v1320 = vtanh.pop %v1080
  %v1321 = vtanh.pop %v1083
  %v1322 = vtanh.pop %v1088
  %v1323 = vtanh.pop %v1091
  %v1324 = vtanh.pop %v1096
  %v1325 = vtanh.pop %v1099
  %v1326 = vtanh.pop %v1104
  %v1327 = vtanh.pop %v1107
  %v1328 = vtanh.pop %v1112
  %v1329 = vtanh.pop %v1115
  %v1330 = vtanh.pop %v1120
  %v1331 = vtanh.pop %v1123
  %v1332 = vtanh.pop %v1128
  %v1333 = vtanh.pop %v1131
  %v1334 = vtanh.pop %v1136
  %v1335 = vtanh.pop %v1139
  %v1336 = vtanh.pop %v1144
  %v1337 = vtanh.pop %v1147
  %v1338 = vtanh.pop %v1152
  %v1339 = vtanh.pop %v1155
  %v1340 = vtanh.pop %v1160
  %v1341 = vtanh.pop %v1163
  %v1342 = vtanh.pop %v1168
  %v1343 = vtanh.pop %v1171
  %v1344 = vtanh.pop %v1176
  %v1345 = vtanh.pop %v1179
  %v1346 = vtanh.pop %v1184
  %v1347 = vtanh.pop %v1187
  %v1348 = vtanh.pop %v1192
  %v1349 = vtanh.pop %v1195
  %v1350 = vtanh.pop %v1200
  %v1351 = vtanh.pop %v1203
  %v1352 = vtanh.pop %v1208
  %v1353 = vtanh.pop %v1211
  %v1354 = vtanh.pop %v1216
  %v1355 = vtanh.pop %v1219
  %v1356 = vtanh.pop %v1224
  %v1357 = vtanh.pop %v1227
  %v1358 = vpack.c.bf16 %v1231, %v1230
  %v1359 = vpack.c.bf16 %v1233, %v1232
  %v1360 = vpack.c.bf16 %v1235, %v1234
  %v1361 = vpack.c.bf16 %v1237, %v1236
  %v1362 = vpack.c.bf16 %v1239, %v1238
  %v1363 = vpack.c.bf16 %v1241, %v1240
  %v1364 = vpack.c.bf16 %v1243, %v1242
  %v1365 = vpack.c.bf16 %v1245, %v1244
  %v1366 = vpack.c.bf16 %v1247, %v1246
  %v1367 = vpack.c.bf16 %v1249, %v1248
  %v1368 = vpack.c.bf16 %v1251, %v1250
  %v1369 = vpack.c.bf16 %v1253, %v1252
  %v1370 = vpack.c.bf16 %v1255, %v1254
  %v1371 = vpack.c.bf16 %v1257, %v1256
  %v1372 = vpack.c.bf16 %v1259, %v1258
  %v1373 = vpack.c.bf16 %v1261, %v1260
  %v1374 = vpack.c.bf16 %v1263, %v1262
  %v1375 = vpack.c.bf16 %v1265, %v1264
  %v1376 = vpack.c.bf16 %v1267, %v1266
  %v1377 = vpack.c.bf16 %v1269, %v1268
  %v1378 = vpack.c.bf16 %v1271, %v1270
  %v1379 = vpack.c.bf16 %v1273, %v1272
  %v1380 = vpack.c.bf16 %v1275, %v1274
  %v1381 = vpack.c.bf16 %v1277, %v1276
  %v1382 = vpack.c.bf16 %v1279, %v1278
  %v1383 = vpack.c.bf16 %v1281, %v1280
  %v1384 = vpack.c.bf16 %v1283, %v1282
  %v1385 = vpack.c.bf16 %v1285, %v1284
  %v1386 = vpack.c.bf16 %v1287, %v1286
  %v1387 = vpack.c.bf16 %v1289, %v1288
  %v1388 = vpack.c.bf16 %v1291, %v1290
  %v1389 = vpack.c.bf16 %v1293, %v1292
  %v1390 = vpack.c.bf16 %v1295, %v1294
  %v1391 = vpack.c.bf16 %v1297, %v1296
  %v1392 = vpack.c.bf16 %v1299, %v1298
  %v1393 = vpack.c.bf16 %v1301, %v1300
  %v1394 = vpack.c.bf16 %v1303, %v1302
  %v1395 = vpack.c.bf16 %v1305, %v1304
  %v1396 = vpack.c.bf16 %v1307, %v1306
  %v1397 = vpack.c.bf16 %v1309, %v1308
  %v1398 = vpack.c.bf16 %v1311, %v1310
  %v1399 = vpack.c.bf16 %v1313, %v1312
  %v1400 = vpack.c.bf16 %v1315, %v1314
  %v1401 = vpack.c.bf16 %v1317, %v1316
  %v1402 = vpack.c.bf16 %v1319, %v1318
  %v1403 = vpack.c.bf16 %v1321, %v1320
  %v1404 = vpack.c.bf16 %v1323, %v1322
  %v1405 = vpack.c.bf16 %v1325, %v1324
  %v1406 = vpack.c.bf16 %v1327, %v1326
  %v1407 = vpack.c.bf16 %v1329, %v1328
  %v1408 = vpack.c.bf16 %v1331, %v1330
  %v1409 = vpack.c.bf16 %v1333, %v1332
  %v1410 = vpack.c.bf16 %v1335, %v1334
  %v1411 = vpack.c.bf16 %v1337, %v1336
  %v1412 = vpack.c.bf16 %v1339, %v1338
  %v1413 = vpack.c.bf16 %v1341, %v1340
  %v1414 = vpack.c.bf16 %v1343, %v1342
  %v1415 = vpack.c.bf16 %v1345, %v1344
  %v1416 = vpack.c.bf16 %v1347, %v1346
  %v1417 = vpack.c.bf16 %v1349, %v1348
  %v1418 = vpack.c.bf16 %v1351, %v1350
  %v1419 = vpack.c.bf16 %v1353, %v1352
  %v1420 = vpack.c.bf16 %v1355, %v1354
  %v1421 = vpack.c.bf16 %v1357, %v1356
  %v1422 = vld [vmem:[%s3] sm:$0xf]
  %v1423 = vld [vmem:[%s3 + $0x4] sm:$0xf]
  %v1424 = vld [vmem:[%s3 + $0x8] sm:$0xf]
  %v1425 = vld [vmem:[%s3 + $0xc] sm:$0xf]
  %v1426 = vld [vmem:[%s3 + $0x10] sm:$0xf]
  %v1427 = vld [vmem:[%s3 + $0x14] sm:$0xf]
  %v1428 = vld [vmem:[%s3 + $0x18] sm:$0xf]
  %v1429 = vld [vmem:[%s3 + $0x1c] sm:$0xf]
  %v1430 = vld [vmem:[%s4] sm:$0x1]
  %v1432 = vlaneseq
  %v1433 = vshrl.u32 %v1432, 7
  %v1434 = vsub.s32 0, %v1433
  %v1435 = vrot.slane %v1430, %v1434
  %v1445 = vunpack.c.l.b16 %v1422
  %v1446 = vunpack.c.l.b16 %v1423
  %v1447 = vunpack.c.l.b16 %v1424
  %v1448 = vunpack.c.l.b16 %v1425
  %v1449 = vunpack.c.l.b16 %v1426
  %v1450 = vunpack.c.l.b16 %v1427
  %v1451 = vunpack.c.l.b16 %v1428
  %v1452 = vunpack.c.l.b16 %v1429
  %v1453 = vpack.c.b16 %v1446, %v1445
  %v1454 = vpack.c.b16 %v1448, %v1447
  %v1455 = vpack.c.b16 %v1450, %v1449
  %v1456 = vpack.c.b16 %v1452, %v1451
  %vm1461 = vcmask 523264
  %v1463 = vsel %vm1461, %v1358, 0
  %v1466 = vsel %vm1461, %v1359, 0
  %v1469 = vsel %vm1461, %v1360, 0
  %v1472 = vsel %vm1461, %v1361, 0
  %v1475 = vsel %vm1461, %v1362, 0
  %v1478 = vsel %vm1461, %v1363, 0
  %v1481 = vsel %vm1461, %v1364, 0
  %v1484 = vsel %vm1461, %v1365, 0
  %v1487 = vsel %vm1461, %v1366, 0
  %v1490 = vsel %vm1461, %v1367, 0
  %v1493 = vsel %vm1461, %v1368, 0
  %v1496 = vsel %vm1461, %v1369, 0
  %v1499 = vsel %vm1461, %v1370, 0
  %v1502 = vsel %vm1461, %v1371, 0
  %v1505 = vsel %vm1461, %v1372, 0
  %v1508 = vsel %vm1461, %v1373, 0
  %v1511 = vsel %vm1461, %v1374, 0
  %v1514 = vsel %vm1461, %v1375, 0
  %v1517 = vsel %vm1461, %v1376, 0
  %v1520 = vsel %vm1461, %v1377, 0
  %v1523 = vsel %vm1461, %v1378, 0
  %v1526 = vsel %vm1461, %v1379, 0
  %v1529 = vsel %vm1461, %v1380, 0
  %v1532 = vsel %vm1461, %v1381, 0
  %v1535 = vsel %vm1461, %v1382, 0
  %v1538 = vsel %vm1461, %v1383, 0
  %v1541 = vsel %vm1461, %v1384, 0
  %v1544 = vsel %vm1461, %v1385, 0
  %v1547 = vsel %vm1461, %v1386, 0
  %v1550 = vsel %vm1461, %v1387, 0
  %v1553 = vsel %vm1461, %v1388, 0
  %v1556 = vsel %vm1461, %v1389, 0
  %v1559 = vsel %vm1461, %v1390, 0
  %v1562 = vsel %vm1461, %v1391, 0
  %v1565 = vsel %vm1461, %v1392, 0
  %v1568 = vsel %vm1461, %v1393, 0
  %v1571 = vsel %vm1461, %v1394, 0
  %v1574 = vsel %vm1461, %v1395, 0
  %v1577 = vsel %vm1461, %v1396, 0
  %v1580 = vsel %vm1461, %v1397, 0
  %v1583 = vsel %vm1461, %v1398, 0
  %v1586 = vsel %vm1461, %v1399, 0
  %v1589 = vsel %vm1461, %v1400, 0
  %v1592 = vsel %vm1461, %v1401, 0
  %v1595 = vsel %vm1461, %v1402, 0
  %v1598 = vsel %vm1461, %v1403, 0
  %v1601 = vsel %vm1461, %v1404, 0
  %v1604 = vsel %vm1461, %v1405, 0
  %v1607 = vsel %vm1461, %v1406, 0
  %v1610 = vsel %vm1461, %v1407, 0
  %v1613 = vsel %vm1461, %v1408, 0
  %v1616 = vsel %vm1461, %v1409, 0
  %v1619 = vsel %vm1461, %v1410, 0
  %v1622 = vsel %vm1461, %v1411, 0
  %v1625 = vsel %vm1461, %v1412, 0
  %v1628 = vsel %vm1461, %v1413, 0
  %v1631 = vsel %vm1461, %v1414, 0
  %v1634 = vsel %vm1461, %v1415, 0
  %v1637 = vsel %vm1461, %v1416, 0
  %v1640 = vsel %vm1461, %v1417, 0
  %v1643 = vsel %vm1461, %v1418, 0
  %v1646 = vsel %vm1461, %v1419, 0
  %v1649 = vsel %vm1461, %v1420, 0
  %v1652 = vsel %vm1461, %v1421, 0
  %1654 = vmatprep.subr.bf16.mxu0 0
  %1655 = vmatpush1.bf16.msra.mxu0 0
  %1656 = vmatprep.subr.bf16.mxu0 0
  %1657 = vmatpush1.bf16.msra.mxu0 0
  %1658 = vmatprep.subr.bf16.mxu0 0
  %1659 = vmatpush1.bf16.msra.mxu0 0
  %1660 = vmatprep.subr.bf16.mxu0 0
  %1661 = vmatpush1.bf16.msra.mxu0 0
  %1662 = vmatprep.subr.bf16.mxu0 0
  %1663 = vmatpush1.bf16.msra.mxu0 %v1456
  %1664 = vmatprep.subr.bf16.mxu0 0
  %1665 = vmatpush1.bf16.msra.mxu0 %v1455
  %1666 = vmatprep.subr.bf16.mxu0 0
  %1667 = vmatpush1.bf16.msra.mxu0 %v1454
  %1668 = vmatprep.subr.bf16.mxu0 0
  %1669 = vmatpush1.bf16.msra.mxu0 %v1453
  %1670 = vmatprep.subr.bf16.mxu0 0
  %1671 = vmatpush2.bf16.msra.mxu0 0
  %1672 = vmatprep.subr.bf16.mxu0 0
  %1673 = vmatpush2.bf16.msra.mxu0 0
  %1674 = vmatprep.subr.bf16.mxu0 0
  %1675 = vmatpush2.bf16.msra.mxu0 0
  %1676 = vmatprep.subr.bf16.mxu0 0
  %1677 = vmatpush2.bf16.msra.mxu0 0
  %1678 = vmatprep.subr.bf16.mxu0 0
  %1679 = vmatpush2.bf16.msra.mxu0 0
  %1680 = vmatprep.subr.bf16.mxu0 0
  %1681 = vmatpush2.bf16.msra.mxu0 0
  %1682 = vmatprep.subr.bf16.mxu0 0
  %1683 = vmatpush2.bf16.msra.mxu0 0
  %1684 = vmatprep.subr.bf16.mxu0 0
  %1685 = vmatpush2.bf16.msra.mxu0 0
  %1686 = vmatprep.mubr.bf16.mxu0 0
  %1687 = vmatmul.mubr.bf16.gmra.mxu0 %v1463
  %v1688 = vpop.f32.mrf.mxu0
  %v1689 = vadd.f32 %v1435, %v1688
  %v1690 = vpop.f32.mrf.mxu0
  %v1691 = vpop.f32.mrf.mxu0
  %v1692 = vadd.f32 %v1435, %v1691
  %v1693 = vpop.f32.mrf.mxu0
  %1694 = vmatprep.mubr.bf16.mxu0 0
  %1695 = vmatmul.mubr.bf16.gmra.mxu0 %v1466
  %v1696 = vpop.f32.mrf.mxu0
  %v1697 = vadd.f32 %v1435, %v1696
  %v1698 = vpop.f32.mrf.mxu0
  %v1699 = vpop.f32.mrf.mxu0
  %v1700 = vadd.f32 %v1435, %v1699
  %v1701 = vpop.f32.mrf.mxu0
  %1702 = vmatprep.mubr.bf16.mxu0 0
  %1703 = vmatmul.mubr.bf16.gmra.mxu0 %v1469
  %v1704 = vpop.f32.mrf.mxu0
  %v1705 = vadd.f32 %v1435, %v1704
  %v1706 = vpop.f32.mrf.mxu0
  %v1707 = vpop.f32.mrf.mxu0
  %v1708 = vadd.f32 %v1435, %v1707
  %v1709 = vpop.f32.mrf.mxu0
  %1710 = vmatprep.mubr.bf16.mxu0 0
  %1711 = vmatmul.mubr.bf16.gmra.mxu0 %v1472
  %v1712 = vpop.f32.mrf.mxu0
  %v1713 = vadd.f32 %v1435, %v1712
  %v1714 = vpop.f32.mrf.mxu0
  %v1715 = vpop.f32.mrf.mxu0
  %v1716 = vadd.f32 %v1435, %v1715
  %v1717 = vpop.f32.mrf.mxu0
  %1718 = vmatprep.mubr.bf16.mxu0 0
  %1719 = vmatmul.mubr.bf16.gmra.mxu0 %v1475
  %v1720 = vpop.f32.mrf.mxu0
  %v1721 = vadd.f32 %v1435, %v1720
  %v1722 = vpop.f32.mrf.mxu0
  %v1723 = vpop.f32.mrf.mxu0
  %v1724 = vadd.f32 %v1435, %v1723
  %v1725 = vpop.f32.mrf.mxu0
  %1726 = vmatprep.mubr.bf16.mxu0 0
  %1727 = vmatmul.mubr.bf16.gmra.mxu0 %v1478
  %v1728 = vpop.f32.mrf.mxu0
  %v1729 = vadd.f32 %v1435, %v1728
  %v1730 = vpop.f32.mrf.mxu0
  %v1731 = vpop.f32.mrf.mxu0
  %v1732 = vadd.f32 %v1435, %v1731
  %v1733 = vpop.f32.mrf.mxu0
  %1734 = vmatprep.mubr.bf16.mxu0 0
  %1735 = vmatmul.mubr.bf16.gmra.mxu0 %v1481
  %v1736 = vpop.f32.mrf.mxu0
  %v1737 = vadd.f32 %v1435, %v1736
  %v1738 = vpop.f32.mrf.mxu0
  %v1739 = vpop.f32.mrf.mxu0
  %v1740 = vadd.f32 %v1435, %v1739
  %v1741 = vpop.f32.mrf.mxu0
  %1742 = vmatprep.mubr.bf16.mxu0 0
  %1743 = vmatmul.mubr.bf16.gmra.mxu0 %v1484
  %v1744 = vpop.f32.mrf.mxu0
  %v1745 = vadd.f32 %v1435, %v1744
  %v1746 = vpop.f32.mrf.mxu0
  %v1747 = vpop.f32.mrf.mxu0
  %v1748 = vadd.f32 %v1435, %v1747
  %v1749 = vpop.f32.mrf.mxu0
  %1750 = vmatprep.mubr.bf16.mxu0 0
  %1751 = vmatmul.mubr.bf16.gmra.mxu0 %v1487
  %v1752 = vpop.f32.mrf.mxu0
  %v1753 = vadd.f32 %v1435, %v1752
  %v1754 = vpop.f32.mrf.mxu0
  %v1755 = vpop.f32.mrf.mxu0
  %v1756 = vadd.f32 %v1435, %v1755
  %v1757 = vpop.f32.mrf.mxu0
  %1758 = vmatprep.mubr.bf16.mxu0 0
  %1759 = vmatmul.mubr.bf16.gmra.mxu0 %v1490
  %v1760 = vpop.f32.mrf.mxu0
  %v1761 = vadd.f32 %v1435, %v1760
  %v1762 = vpop.f32.mrf.mxu0
  %v1763 = vpop.f32.mrf.mxu0
  %v1764 = vadd.f32 %v1435, %v1763
  %v1765 = vpop.f32.mrf.mxu0
  %1766 = vmatprep.mubr.bf16.mxu0 0
  %1767 = vmatmul.mubr.bf16.gmra.mxu0 %v1493
  %v1768 = vpop.f32.mrf.mxu0
  %v1769 = vadd.f32 %v1435, %v1768
  %v1770 = vpop.f32.mrf.mxu0
  %v1771 = vpop.f32.mrf.mxu0
  %v1772 = vadd.f32 %v1435, %v1771
  %v1773 = vpop.f32.mrf.mxu0
  %1774 = vmatprep.mubr.bf16.mxu0 0
  %1775 = vmatmul.mubr.bf16.gmra.mxu0 %v1496
  %v1776 = vpop.f32.mrf.mxu0
  %v1777 = vadd.f32 %v1435, %v1776
  %v1778 = vpop.f32.mrf.mxu0
  %v1779 = vpop.f32.mrf.mxu0
  %v1780 = vadd.f32 %v1435, %v1779
  %v1781 = vpop.f32.mrf.mxu0
  %1782 = vmatprep.mubr.bf16.mxu0 0
  %1783 = vmatmul.mubr.bf16.gmra.mxu0 %v1499
  %v1784 = vpop.f32.mrf.mxu0
  %v1785 = vadd.f32 %v1435, %v1784
  %v1786 = vpop.f32.mrf.mxu0
  %v1787 = vpop.f32.mrf.mxu0
  %v1788 = vadd.f32 %v1435, %v1787
  %v1789 = vpop.f32.mrf.mxu0
  %1790 = vmatprep.mubr.bf16.mxu0 0
  %1791 = vmatmul.mubr.bf16.gmra.mxu0 %v1502
  %v1792 = vpop.f32.mrf.mxu0
  %v1793 = vadd.f32 %v1435, %v1792
  %v1794 = vpop.f32.mrf.mxu0
  %v1795 = vpop.f32.mrf.mxu0
  %v1796 = vadd.f32 %v1435, %v1795
  %v1797 = vpop.f32.mrf.mxu0
  %1798 = vmatprep.mubr.bf16.mxu0 0
  %1799 = vmatmul.mubr.bf16.gmra.mxu0 %v1505
  %v1800 = vpop.f32.mrf.mxu0
  %v1801 = vadd.f32 %v1435, %v1800
  %v1802 = vpop.f32.mrf.mxu0
  %v1803 = vpop.f32.mrf.mxu0
  %v1804 = vadd.f32 %v1435, %v1803
  %v1805 = vpop.f32.mrf.mxu0
  %1806 = vmatprep.mubr.bf16.mxu0 0
  %1807 = vmatmul.mubr.bf16.gmra.mxu0 %v1508
  %v1808 = vpop.f32.mrf.mxu0
  %v1809 = vadd.f32 %v1435, %v1808
  %v1810 = vpop.f32.mrf.mxu0
  %v1811 = vpop.f32.mrf.mxu0
  %v1812 = vadd.f32 %v1435, %v1811
  %v1813 = vpop.f32.mrf.mxu0
  %1814 = vmatprep.mubr.bf16.mxu0 0
  %1815 = vmatmul.mubr.bf16.gmra.mxu0 %v1511
  %v1816 = vpop.f32.mrf.mxu0
  %v1817 = vadd.f32 %v1435, %v1816
  %v1818 = vpop.f32.mrf.mxu0
  %v1819 = vpop.f32.mrf.mxu0
  %v1820 = vadd.f32 %v1435, %v1819
  %v1821 = vpop.f32.mrf.mxu0
  %1822 = vmatprep.mubr.bf16.mxu0 0
  %1823 = vmatmul.mubr.bf16.gmra.mxu0 %v1514
  %v1824 = vpop.f32.mrf.mxu0
  %v1825 = vadd.f32 %v1435, %v1824
  %v1826 = vpop.f32.mrf.mxu0
  %v1827 = vpop.f32.mrf.mxu0
  %v1828 = vadd.f32 %v1435, %v1827
  %v1829 = vpop.f32.mrf.mxu0
  %1830 = vmatprep.mubr.bf16.mxu0 0
  %1831 = vmatmul.mubr.bf16.gmra.mxu0 %v1517
  %v1832 = vpop.f32.mrf.mxu0
  %v1833 = vadd.f32 %v1435, %v1832
  %v1834 = vpop.f32.mrf.mxu0
  %v1835 = vpop.f32.mrf.mxu0
  %v1836 = vadd.f32 %v1435, %v1835
  %v1837 = vpop.f32.mrf.mxu0
  %1838 = vmatprep.mubr.bf16.mxu0 0
  %1839 = vmatmul.mubr.bf16.gmra.mxu0 %v1520
  %v1840 = vpop.f32.mrf.mxu0
  %v1841 = vadd.f32 %v1435, %v1840
  %v1842 = vpop.f32.mrf.mxu0
  %v1843 = vpop.f32.mrf.mxu0
  %v1844 = vadd.f32 %v1435, %v1843
  %v1845 = vpop.f32.mrf.mxu0
  %1846 = vmatprep.mubr.bf16.mxu0 0
  %1847 = vmatmul.mubr.bf16.gmra.mxu0 %v1523
  %v1848 = vpop.f32.mrf.mxu0
  %v1849 = vadd.f32 %v1435, %v1848
  %v1850 = vpop.f32.mrf.mxu0
  %v1851 = vpop.f32.mrf.mxu0
  %v1852 = vadd.f32 %v1435, %v1851
  %v1853 = vpop.f32.mrf.mxu0
  %1854 = vmatprep.mubr.bf16.mxu0 0
  %1855 = vmatmul.mubr.bf16.gmra.mxu0 %v1526
  %v1856 = vpop.f32.mrf.mxu0
  %v1857 = vadd.f32 %v1435, %v1856
  %v1858 = vpop.f32.mrf.mxu0
  %v1859 = vpop.f32.mrf.mxu0
  %v1860 = vadd.f32 %v1435, %v1859
  %v1861 = vpop.f32.mrf.mxu0
  %1862 = vmatprep.mubr.bf16.mxu0 0
  %1863 = vmatmul.mubr.bf16.gmra.mxu0 %v1529
  %v1864 = vpop.f32.mrf.mxu0
  %v1865 = vadd.f32 %v1435, %v1864
  %v1866 = vpop.f32.mrf.mxu0
  %v1867 = vpop.f32.mrf.mxu0
  %v1868 = vadd.f32 %v1435, %v1867
  %v1869 = vpop.f32.mrf.mxu0
  %1870 = vmatprep.mubr.bf16.mxu0 0
  %1871 = vmatmul.mubr.bf16.gmra.mxu0 %v1532
  %v1872 = vpop.f32.mrf.mxu0
  %v1873 = vadd.f32 %v1435, %v1872
  %v1874 = vpop.f32.mrf.mxu0
  %v1875 = vpop.f32.mrf.mxu0
  %v1876 = vadd.f32 %v1435, %v1875
  %v1877 = vpop.f32.mrf.mxu0
  %1878 = vmatprep.mubr.bf16.mxu0 0
  %1879 = vmatmul.mubr.bf16.gmra.mxu0 %v1535
  %v1880 = vpop.f32.mrf.mxu0
  %v1881 = vadd.f32 %v1435, %v1880
  %v1882 = vpop.f32.mrf.mxu0
  %v1883 = vpop.f32.mrf.mxu0
  %v1884 = vadd.f32 %v1435, %v1883
  %v1885 = vpop.f32.mrf.mxu0
  %1886 = vmatprep.mubr.bf16.mxu0 0
  %1887 = vmatmul.mubr.bf16.gmra.mxu0 %v1538
  %v1888 = vpop.f32.mrf.mxu0
  %v1889 = vadd.f32 %v1435, %v1888
  %v1890 = vpop.f32.mrf.mxu0
  %v1891 = vpop.f32.mrf.mxu0
  %v1892 = vadd.f32 %v1435, %v1891
  %v1893 = vpop.f32.mrf.mxu0
  %1894 = vmatprep.mubr.bf16.mxu0 0
  %1895 = vmatmul.mubr.bf16.gmra.mxu0 %v1541
  %v1896 = vpop.f32.mrf.mxu0
  %v1897 = vadd.f32 %v1435, %v1896
  %v1898 = vpop.f32.mrf.mxu0
  %v1899 = vpop.f32.mrf.mxu0
  %v1900 = vadd.f32 %v1435, %v1899
  %v1901 = vpop.f32.mrf.mxu0
  %1902 = vmatprep.mubr.bf16.mxu0 0
  %1903 = vmatmul.mubr.bf16.gmra.mxu0 %v1544
  %v1904 = vpop.f32.mrf.mxu0
  %v1905 = vadd.f32 %v1435, %v1904
  %v1906 = vpop.f32.mrf.mxu0
  %v1907 = vpop.f32.mrf.mxu0
  %v1908 = vadd.f32 %v1435, %v1907
  %v1909 = vpop.f32.mrf.mxu0
  %1910 = vmatprep.mubr.bf16.mxu0 0
  %1911 = vmatmul.mubr.bf16.gmra.mxu0 %v1547
  %v1912 = vpop.f32.mrf.mxu0
  %v1913 = vadd.f32 %v1435, %v1912
  %v1914 = vpop.f32.mrf.mxu0
  %v1915 = vpop.f32.mrf.mxu0
  %v1916 = vadd.f32 %v1435, %v1915
  %v1917 = vpop.f32.mrf.mxu0
  %1918 = vmatprep.mubr.bf16.mxu0 0
  %1919 = vmatmul.mubr.bf16.gmra.mxu0 %v1550
  %v1920 = vpop.f32.mrf.mxu0
  %v1921 = vadd.f32 %v1435, %v1920
  %v1922 = vpop.f32.mrf.mxu0
  %v1923 = vpop.f32.mrf.mxu0
  %v1924 = vadd.f32 %v1435, %v1923
  %v1925 = vpop.f32.mrf.mxu0
  %1926 = vmatprep.mubr.bf16.mxu0 0
  %1927 = vmatmul.mubr.bf16.gmra.mxu0 %v1553
  %v1928 = vpop.f32.mrf.mxu0
  %v1929 = vadd.f32 %v1435, %v1928
  %v1930 = vpop.f32.mrf.mxu0
  %v1931 = vpop.f32.mrf.mxu0
  %v1932 = vadd.f32 %v1435, %v1931
  %v1933 = vpop.f32.mrf.mxu0
  %1934 = vmatprep.mubr.bf16.mxu0 0
  %1935 = vmatmul.mubr.bf16.gmra.mxu0 %v1556
  %v1936 = vpop.f32.mrf.mxu0
  %v1937 = vadd.f32 %v1435, %v1936
  %v1938 = vpop.f32.mrf.mxu0
  %v1939 = vpop.f32.mrf.mxu0
  %v1940 = vadd.f32 %v1435, %v1939
  %v1941 = vpop.f32.mrf.mxu0
  %1942 = vmatprep.mubr.bf16.mxu0 0
  %1943 = vmatmul.mubr.bf16.gmra.mxu0 %v1559
  %v1944 = vpop.f32.mrf.mxu0
  %v1945 = vadd.f32 %v1435, %v1944
  %v1946 = vpop.f32.mrf.mxu0
  %v1947 = vpop.f32.mrf.mxu0
  %v1948 = vadd.f32 %v1435, %v1947
  %v1949 = vpop.f32.mrf.mxu0
  %1950 = vmatprep.mubr.bf16.mxu0 0
  %1951 = vmatmul.mubr.bf16.gmra.mxu0 %v1562
  %v1952 = vpop.f32.mrf.mxu0
  %v1953 = vadd.f32 %v1435, %v1952
  %v1954 = vpop.f32.mrf.mxu0
  %v1955 = vpop.f32.mrf.mxu0
  %v1956 = vadd.f32 %v1435, %v1955
  %v1957 = vpop.f32.mrf.mxu0
  %1958 = vmatprep.mubr.bf16.mxu0 0
  %1959 = vmatmul.mubr.bf16.gmra.mxu0 %v1565
  %v1960 = vpop.f32.mrf.mxu0
  %v1961 = vadd.f32 %v1435, %v1960
  %v1962 = vpop.f32.mrf.mxu0
  %v1963 = vpop.f32.mrf.mxu0
  %v1964 = vadd.f32 %v1435, %v1963
  %v1965 = vpop.f32.mrf.mxu0
  %1966 = vmatprep.mubr.bf16.mxu0 0
  %1967 = vmatmul.mubr.bf16.gmra.mxu0 %v1568
  %v1968 = vpop.f32.mrf.mxu0
  %v1969 = vadd.f32 %v1435, %v1968
  %v1970 = vpop.f32.mrf.mxu0
  %v1971 = vpop.f32.mrf.mxu0
  %v1972 = vadd.f32 %v1435, %v1971
  %v1973 = vpop.f32.mrf.mxu0
  %1974 = vmatprep.mubr.bf16.mxu0 0
  %1975 = vmatmul.mubr.bf16.gmra.mxu0 %v1571
  %v1976 = vpop.f32.mrf.mxu0
  %v1977 = vadd.f32 %v1435, %v1976
  %v1978 = vpop.f32.mrf.mxu0
  %v1979 = vpop.f32.mrf.mxu0
  %v1980 = vadd.f32 %v1435, %v1979
  %v1981 = vpop.f32.mrf.mxu0
  %1982 = vmatprep.mubr.bf16.mxu0 0
  %1983 = vmatmul.mubr.bf16.gmra.mxu0 %v1574
  %v1984 = vpop.f32.mrf.mxu0
  %v1985 = vadd.f32 %v1435, %v1984
  %v1986 = vpop.f32.mrf.mxu0
  %v1987 = vpop.f32.mrf.mxu0
  %v1988 = vadd.f32 %v1435, %v1987
  %v1989 = vpop.f32.mrf.mxu0
  %1990 = vmatprep.mubr.bf16.mxu0 0
  %1991 = vmatmul.mubr.bf16.gmra.mxu0 %v1577
  %v1992 = vpop.f32.mrf.mxu0
  %v1993 = vadd.f32 %v1435, %v1992
  %v1994 = vpop.f32.mrf.mxu0
  %v1995 = vpop.f32.mrf.mxu0
  %v1996 = vadd.f32 %v1435, %v1995
  %v1997 = vpop.f32.mrf.mxu0
  %1998 = vmatprep.mubr.bf16.mxu0 0
  %1999 = vmatmul.mubr.bf16.gmra.mxu0 %v1580
  %v2000 = vpop.f32.mrf.mxu0
  %v2001 = vadd.f32 %v1435, %v2000
  %v2002 = vpop.f32.mrf.mxu0
  %v2003 = vpop.f32.mrf.mxu0
  %v2004 = vadd.f32 %v1435, %v2003
  %v2005 = vpop.f32.mrf.mxu0
  %2006 = vmatprep.mubr.bf16.mxu0 0
  %2007 = vmatmul.mubr.bf16.gmra.mxu0 %v1583
  %v2008 = vpop.f32.mrf.mxu0
  %v2009 = vadd.f32 %v1435, %v2008
  %v2010 = vpop.f32.mrf.mxu0
  %v2011 = vpop.f32.mrf.mxu0
  %v2012 = vadd.f32 %v1435, %v2011
  %v2013 = vpop.f32.mrf.mxu0
  %2014 = vmatprep.mubr.bf16.mxu0 0
  %2015 = vmatmul.mubr.bf16.gmra.mxu0 %v1586
  %v2016 = vpop.f32.mrf.mxu0
  %v2017 = vadd.f32 %v1435, %v2016
  %v2018 = vpop.f32.mrf.mxu0
  %v2019 = vpop.f32.mrf.mxu0
  %v2020 = vadd.f32 %v1435, %v2019
  %v2021 = vpop.f32.mrf.mxu0
  %2022 = vmatprep.mubr.bf16.mxu0 0
  %2023 = vmatmul.mubr.bf16.gmra.mxu0 %v1589
  %v2024 = vpop.f32.mrf.mxu0
  %v2025 = vadd.f32 %v1435, %v2024
  %v2026 = vpop.f32.mrf.mxu0
  %v2027 = vpop.f32.mrf.mxu0
  %v2028 = vadd.f32 %v1435, %v2027
  %v2029 = vpop.f32.mrf.mxu0
  %2030 = vmatprep.mubr.bf16.mxu0 0
  %2031 = vmatmul.mubr.bf16.gmra.mxu0 %v1592
  %v2032 = vpop.f32.mrf.mxu0
  %v2033 = vadd.f32 %v1435, %v2032
  %v2034 = vpop.f32.mrf.mxu0
  %v2035 = vpop.f32.mrf.mxu0
  %v2036 = vadd.f32 %v1435, %v2035
  %v2037 = vpop.f32.mrf.mxu0
  %2038 = vmatprep.mubr.bf16.mxu0 0
  %2039 = vmatmul.mubr.bf16.gmra.mxu0 %v1595
  %v2040 = vpop.f32.mrf.mxu0
  %v2041 = vadd.f32 %v1435, %v2040
  %v2042 = vpop.f32.mrf.mxu0
  %v2043 = vpop.f32.mrf.mxu0
  %v2044 = vadd.f32 %v1435, %v2043
  %v2045 = vpop.f32.mrf.mxu0
  %2046 = vmatprep.mubr.bf16.mxu0 0
  %2047 = vmatmul.mubr.bf16.gmra.mxu0 %v1598
  %v2048 = vpop.f32.mrf.mxu0
  %v2049 = vadd.f32 %v1435, %v2048
  %v2050 = vpop.f32.mrf.mxu0
  %v2051 = vpop.f32.mrf.mxu0
  %v2052 = vadd.f32 %v1435, %v2051
  %v2053 = vpop.f32.mrf.mxu0
  %2054 = vmatprep.mubr.bf16.mxu0 0
  %2055 = vmatmul.mubr.bf16.gmra.mxu0 %v1601
  %v2056 = vpop.f32.mrf.mxu0
  %v2057 = vadd.f32 %v1435, %v2056
  %v2058 = vpop.f32.mrf.mxu0
  %v2059 = vpop.f32.mrf.mxu0
  %v2060 = vadd.f32 %v1435, %v2059
  %v2061 = vpop.f32.mrf.mxu0
  %2062 = vmatprep.mubr.bf16.mxu0 0
  %2063 = vmatmul.mubr.bf16.gmra.mxu0 %v1604
  %v2064 = vpop.f32.mrf.mxu0
  %v2065 = vadd.f32 %v1435, %v2064
  %v2066 = vpop.f32.mrf.mxu0
  %v2067 = vpop.f32.mrf.mxu0
  %v2068 = vadd.f32 %v1435, %v2067
  %v2069 = vpop.f32.mrf.mxu0
  %2070 = vmatprep.mubr.bf16.mxu0 0
  %2071 = vmatmul.mubr.bf16.gmra.mxu0 %v1607
  %v2072 = vpop.f32.mrf.mxu0
  %v2073 = vadd.f32 %v1435, %v2072
  %v2074 = vpop.f32.mrf.mxu0
  %v2075 = vpop.f32.mrf.mxu0
  %v2076 = vadd.f32 %v1435, %v2075
  %v2077 = vpop.f32.mrf.mxu0
  %2078 = vmatprep.mubr.bf16.mxu0 0
  %2079 = vmatmul.mubr.bf16.gmra.mxu0 %v1610
  %v2080 = vpop.f32.mrf.mxu0
  %v2081 = vadd.f32 %v1435, %v2080
  %v2082 = vpop.f32.mrf.mxu0
  %v2083 = vpop.f32.mrf.mxu0
  %v2084 = vadd.f32 %v1435, %v2083
  %v2085 = vpop.f32.mrf.mxu0
  %2086 = vmatprep.mubr.bf16.mxu0 0
  %2087 = vmatmul.mubr.bf16.gmra.mxu0 %v1613
  %v2088 = vpop.f32.mrf.mxu0
  %v2089 = vadd.f32 %v1435, %v2088
  %v2090 = vpop.f32.mrf.mxu0
  %v2091 = vpop.f32.mrf.mxu0
  %v2092 = vadd.f32 %v1435, %v2091
  %v2093 = vpop.f32.mrf.mxu0
  %2094 = vmatprep.mubr.bf16.mxu0 0
  %2095 = vmatmul.mubr.bf16.gmra.mxu0 %v1616
  %v2096 = vpop.f32.mrf.mxu0
  %v2097 = vadd.f32 %v1435, %v2096
  %v2098 = vpop.f32.mrf.mxu0
  %v2099 = vpop.f32.mrf.mxu0
  %v2100 = vadd.f32 %v1435, %v2099
  %v2101 = vpop.f32.mrf.mxu0
  %2102 = vmatprep.mubr.bf16.mxu0 0
  %2103 = vmatmul.mubr.bf16.gmra.mxu0 %v1619
  %v2104 = vpop.f32.mrf.mxu0
  %v2105 = vadd.f32 %v1435, %v2104
  %v2106 = vpop.f32.mrf.mxu0
  %v2107 = vpop.f32.mrf.mxu0
  %v2108 = vadd.f32 %v1435, %v2107
  %v2109 = vpop.f32.mrf.mxu0
  %2110 = vmatprep.mubr.bf16.mxu0 0
  %2111 = vmatmul.mubr.bf16.gmra.mxu0 %v1622
  %v2112 = vpop.f32.mrf.mxu0
  %v2113 = vadd.f32 %v1435, %v2112
  %v2114 = vpop.f32.mrf.mxu0
  %v2115 = vpop.f32.mrf.mxu0
  %v2116 = vadd.f32 %v1435, %v2115
  %v2117 = vpop.f32.mrf.mxu0
  %2118 = vmatprep.mubr.bf16.mxu0 0
  %2119 = vmatmul.mubr.bf16.gmra.mxu0 %v1625
  %v2120 = vpop.f32.mrf.mxu0
  %v2121 = vadd.f32 %v1435, %v2120
  %v2122 = vpop.f32.mrf.mxu0
  %v2123 = vpop.f32.mrf.mxu0
  %v2124 = vadd.f32 %v1435, %v2123
  %v2125 = vpop.f32.mrf.mxu0
  %2126 = vmatprep.mubr.bf16.mxu0 0
  %2127 = vmatmul.mubr.bf16.gmra.mxu0 %v1628
  %v2128 = vpop.f32.mrf.mxu0
  %v2129 = vadd.f32 %v1435, %v2128
  %v2130 = vpop.f32.mrf.mxu0
  %v2131 = vpop.f32.mrf.mxu0
  %v2132 = vadd.f32 %v1435, %v2131
  %v2133 = vpop.f32.mrf.mxu0
  %2134 = vmatprep.mubr.bf16.mxu0 0
  %2135 = vmatmul.mubr.bf16.gmra.mxu0 %v1631
  %v2136 = vpop.f32.mrf.mxu0
  %v2137 = vadd.f32 %v1435, %v2136
  %v2138 = vpop.f32.mrf.mxu0
  %v2139 = vpop.f32.mrf.mxu0
  %v2140 = vadd.f32 %v1435, %v2139
  %v2141 = vpop.f32.mrf.mxu0
  %2142 = vmatprep.mubr.bf16.mxu0 0
  %2143 = vmatmul.mubr.bf16.gmra.mxu0 %v1634
  %v2144 = vpop.f32.mrf.mxu0
  %v2145 = vadd.f32 %v1435, %v2144
  %v2146 = vpop.f32.mrf.mxu0
  %v2147 = vpop.f32.mrf.mxu0
  %v2148 = vadd.f32 %v1435, %v2147
  %v2149 = vpop.f32.mrf.mxu0
  %2150 = vmatprep.mubr.bf16.mxu0 0
  %2151 = vmatmul.mubr.bf16.gmra.mxu0 %v1637
  %v2152 = vpop.f32.mrf.mxu0
  %v2153 = vadd.f32 %v1435, %v2152
  %v2154 = vpop.f32.mrf.mxu0
  %v2155 = vpop.f32.mrf.mxu0
  %v2156 = vadd.f32 %v1435, %v2155
  %v2157 = vpop.f32.mrf.mxu0
  %2158 = vmatprep.mubr.bf16.mxu0 0
  %2159 = vmatmul.mubr.bf16.gmra.mxu0 %v1640
  %v2160 = vpop.f32.mrf.mxu0
  %v2161 = vadd.f32 %v1435, %v2160
  %v2162 = vpop.f32.mrf.mxu0
  %v2163 = vpop.f32.mrf.mxu0
  %v2164 = vadd.f32 %v1435, %v2163
  %v2165 = vpop.f32.mrf.mxu0
  %2166 = vmatprep.mubr.bf16.mxu0 0
  %2167 = vmatmul.mubr.bf16.gmra.mxu0 %v1643
  %v2168 = vpop.f32.mrf.mxu0
  %v2169 = vadd.f32 %v1435, %v2168
  %v2170 = vpop.f32.mrf.mxu0
  %v2171 = vpop.f32.mrf.mxu0
  %v2172 = vadd.f32 %v1435, %v2171
  %v2173 = vpop.f32.mrf.mxu0
  %2174 = vmatprep.mubr.bf16.mxu0 0
  %2175 = vmatmul.mubr.bf16.gmra.mxu0 %v1646
  %v2176 = vpop.f32.mrf.mxu0
  %v2177 = vadd.f32 %v1435, %v2176
  %v2178 = vpop.f32.mrf.mxu0
  %v2179 = vpop.f32.mrf.mxu0
  %v2180 = vadd.f32 %v1435, %v2179
  %v2181 = vpop.f32.mrf.mxu0
  %2182 = vmatprep.mubr.bf16.mxu0 0
  %2183 = vmatmul.mubr.bf16.gmra.mxu0 %v1649
  %v2184 = vpop.f32.mrf.mxu0
  %v2185 = vadd.f32 %v1435, %v2184
  %v2186 = vpop.f32.mrf.mxu0
  %v2187 = vpop.f32.mrf.mxu0
  %v2188 = vadd.f32 %v1435, %v2187
  %v2189 = vpop.f32.mrf.mxu0
  %2190 = vmatprep.mubr.bf16.mxu0 0
  %2191 = vmatmul.mubr.bf16.gmra.mxu0 %v1652
  %v2192 = vpop.f32.mrf.mxu0
  %v2193 = vadd.f32 %v1435, %v2192
  %v2194 = vpop.f32.mrf.mxu0
  %v2195 = vpop.f32.mrf.mxu0
  %v2196 = vadd.f32 %v1435, %v2195
  %v2197 = vpop.f32.mrf.mxu0
  %2198 = vdwg.mxu0
  %v2199 = vtanh.pop %v1689
  %v2200 = vtanh.pop %v1692
  %v2201 = vtanh.pop %v1697
  %v2202 = vtanh.pop %v1700
  %v2203 = vtanh.pop %v1705
  %v2204 = vtanh.pop %v1708
  %v2205 = vtanh.pop %v1713
  %v2206 = vtanh.pop %v1716
  %v2207 = vtanh.pop %v1721
  %v2208 = vtanh.pop %v1724
  %v2209 = vtanh.pop %v1729
  %v2210 = vtanh.pop %v1732
  %v2211 = vtanh.pop %v1737
  %v2212 = vtanh.pop %v1740
  %v2213 = vtanh.pop %v1745
  %v2214 = vtanh.pop %v1748
  %v2215 = vtanh.pop %v1753
  %v2216 = vtanh.pop %v1756
  %v2217 = vtanh.pop %v1761
  %v2218 = vtanh.pop %v1764
  %v2219 = vtanh.pop %v1769
  %v2220 = vtanh.pop %v1772
  %v2221 = vtanh.pop %v1777
  %v2222 = vtanh.pop %v1780
  %v2223 = vtanh.pop %v1785
  %v2224 = vtanh.pop %v1788
  %v2225 = vtanh.pop %v1793
  %v2226 = vtanh.pop %v1796
  %v2227 = vtanh.pop %v1801
  %v2228 = vtanh.pop %v1804
  %v2229 = vtanh.pop %v1809
  %v2230 = vtanh.pop %v1812
  %v2231 = vtanh.pop %v1817
  %v2232 = vtanh.pop %v1820
  %v2233 = vtanh.pop %v1825
  %v2234 = vtanh.pop %v1828
  %v2235 = vtanh.pop %v1833
  %v2236 = vtanh.pop %v1836
  %v2237 = vtanh.pop %v1841
  %v2238 = vtanh.pop %v1844
  %v2239 = vtanh.pop %v1849
  %v2240 = vtanh.pop %v1852
  %v2241 = vtanh.pop %v1857
  %v2242 = vtanh.pop %v1860
  %v2243 = vtanh.pop %v1865
  %v2244 = vtanh.pop %v1868
  %v2245 = vtanh.pop %v1873
  %v2246 = vtanh.pop %v1876
  %v2247 = vtanh.pop %v1881
  %v2248 = vtanh.pop %v1884
  %v2249 = vtanh.pop %v1889
  %v2250 = vtanh.pop %v1892
  %v2251 = vtanh.pop %v1897
  %v2252 = vtanh.pop %v1900
  %v2253 = vtanh.pop %v1905
  %v2254 = vtanh.pop %v1908
  %v2255 = vtanh.pop %v1913
  %v2256 = vtanh.pop %v1916
  %v2257 = vtanh.pop %v1921
  %v2258 = vtanh.pop %v1924
  %v2259 = vtanh.pop %v1929
  %v2260 = vtanh.pop %v1932
  %v2261 = vtanh.pop %v1937
  %v2262 = vtanh.pop %v1940
  %v2263 = vtanh.pop %v1945
  %v2264 = vtanh.pop %v1948
  %v2265 = vtanh.pop %v1953
  %v2266 = vtanh.pop %v1956
  %v2267 = vtanh.pop %v1961
  %v2268 = vtanh.pop %v1964
  %v2269 = vtanh.pop %v1969
  %v2270 = vtanh.pop %v1972
  %v2271 = vtanh.pop %v1977
  %v2272 = vtanh.pop %v1980
  %v2273 = vtanh.pop %v1985
  %v2274 = vtanh.pop %v1988
  %v2275 = vtanh.pop %v1993
  %v2276 = vtanh.pop %v1996
  %v2277 = vtanh.pop %v2001
  %v2278 = vtanh.pop %v2004
  %v2279 = vtanh.pop %v2009
  %v2280 = vtanh.pop %v2012
  %v2281 = vtanh.pop %v2017
  %v2282 = vtanh.pop %v2020
  %v2283 = vtanh.pop %v2025
  %v2284 = vtanh.pop %v2028
  %v2285 = vtanh.pop %v2033
  %v2286 = vtanh.pop %v2036
  %v2287 = vtanh.pop %v2041
  %v2288 = vtanh.pop %v2044
  %v2289 = vtanh.pop %v2049
  %v2290 = vtanh.pop %v2052
  %v2291 = vtanh.pop %v2057
  %v2292 = vtanh.pop %v2060
  %v2293 = vtanh.pop %v2065
  %v2294 = vtanh.pop %v2068
  %v2295 = vtanh.pop %v2073
  %v2296 = vtanh.pop %v2076
  %v2297 = vtanh.pop %v2081
  %v2298 = vtanh.pop %v2084
  %v2299 = vtanh.pop %v2089
  %v2300 = vtanh.pop %v2092
  %v2301 = vtanh.pop %v2097
  %v2302 = vtanh.pop %v2100
  %v2303 = vtanh.pop %v2105
  %v2304 = vtanh.pop %v2108
  %v2305 = vtanh.pop %v2113
  %v2306 = vtanh.pop %v2116
  %v2307 = vtanh.pop %v2121
  %v2308 = vtanh.pop %v2124
  %v2309 = vtanh.pop %v2129
  %v2310 = vtanh.pop %v2132
  %v2311 = vtanh.pop %v2137
  %v2312 = vtanh.pop %v2140
  %v2313 = vtanh.pop %v2145
  %v2314 = vtanh.pop %v2148
  %v2315 = vtanh.pop %v2153
  %v2316 = vtanh.pop %v2156
  %v2317 = vtanh.pop %v2161
  %v2318 = vtanh.pop %v2164
  %v2319 = vtanh.pop %v2169
  %v2320 = vtanh.pop %v2172
  %v2321 = vtanh.pop %v2177
  %v2322 = vtanh.pop %v2180
  %v2323 = vtanh.pop %v2185
  %v2324 = vtanh.pop %v2188
  %v2325 = vtanh.pop %v2193
  %v2326 = vtanh.pop %v2196
  %v2327 = vld [vmem:[%s5] sm:$0x1]
  %v2329 = vlaneseq
  %v2330 = vshrl.u32 %v2329, 7
  %v2331 = vsub.s32 0, %v2330
  %v2332 = vrot.slane %v2327, %v2331
  %v2334 = vmul.f32 %v2199, %v2332
  %v2335 = vmul.f32 %v2200, %v2332
  %v2336 = vmul.f32 %v2201, %v2332
  %v2337 = vmul.f32 %v2202, %v2332
  %v2338 = vmul.f32 %v2203, %v2332
  %v2339 = vmul.f32 %v2204, %v2332
  %v2340 = vmul.f32 %v2205, %v2332
  %v2341 = vmul.f32 %v2206, %v2332
  %v2342 = vmul.f32 %v2207, %v2332
  %v2343 = vmul.f32 %v2208, %v2332
  %v2344 = vmul.f32 %v2209, %v2332
  %v2345 = vmul.f32 %v2210, %v2332
  %v2346 = vmul.f32 %v2211, %v2332
  %v2347 = vmul.f32 %v2212, %v2332
  %v2348 = vmul.f32 %v2213, %v2332
  %v2349 = vmul.f32 %v2214, %v2332
  %v2350 = vmul.f32 %v2215, %v2332
  %v2351 = vmul.f32 %v2216, %v2332
  %v2352 = vmul.f32 %v2217, %v2332
  %v2353 = vmul.f32 %v2218, %v2332
  %v2354 = vmul.f32 %v2219, %v2332
  %v2355 = vmul.f32 %v2220, %v2332
  %v2356 = vmul.f32 %v2221, %v2332
  %v2357 = vmul.f32 %v2222, %v2332
  %v2358 = vmul.f32 %v2223, %v2332
  %v2359 = vmul.f32 %v2224, %v2332
  %v2360 = vmul.f32 %v2225, %v2332
  %v2361 = vmul.f32 %v2226, %v2332
  %v2362 = vmul.f32 %v2227, %v2332
  %v2363 = vmul.f32 %v2228, %v2332
  %v2364 = vmul.f32 %v2229, %v2332
  %v2365 = vmul.f32 %v2230, %v2332
  %v2366 = vmul.f32 %v2231, %v2332
  %v2367 = vmul.f32 %v2232, %v2332
  %v2368 = vmul.f32 %v2233, %v2332
  %v2369 = vmul.f32 %v2234, %v2332
  %v2370 = vmul.f32 %v2235, %v2332
  %v2371 = vmul.f32 %v2236, %v2332
  %v2372 = vmul.f32 %v2237, %v2332
  %v2373 = vmul.f32 %v2238, %v2332
  %v2374 = vmul.f32 %v2239, %v2332
  %v2375 = vmul.f32 %v2240, %v2332
  %v2376 = vmul.f32 %v2241, %v2332
  %v2377 = vmul.f32 %v2242, %v2332
  %v2378 = vmul.f32 %v2243, %v2332
  %v2379 = vmul.f32 %v2244, %v2332
  %v2380 = vmul.f32 %v2245, %v2332
  %v2381 = vmul.f32 %v2246, %v2332
  %v2382 = vmul.f32 %v2247, %v2332
  %v2383 = vmul.f32 %v2248, %v2332
  %v2384 = vmul.f32 %v2249, %v2332
  %v2385 = vmul.f32 %v2250, %v2332
  %v2386 = vmul.f32 %v2251, %v2332
  %v2387 = vmul.f32 %v2252, %v2332
  %v2388 = vmul.f32 %v2253, %v2332
  %v2389 = vmul.f32 %v2254, %v2332
  %v2390 = vmul.f32 %v2255, %v2332
  %v2391 = vmul.f32 %v2256, %v2332
  %v2392 = vmul.f32 %v2257, %v2332
  %v2393 = vmul.f32 %v2258, %v2332
  %v2394 = vmul.f32 %v2259, %v2332
  %v2395 = vmul.f32 %v2260, %v2332
  %v2396 = vmul.f32 %v2261, %v2332
  %v2397 = vmul.f32 %v2262, %v2332
  %v2398 = vmul.f32 %v2263, %v2332
  %v2399 = vmul.f32 %v2264, %v2332
  %v2400 = vmul.f32 %v2265, %v2332
  %v2401 = vmul.f32 %v2266, %v2332
  %v2402 = vmul.f32 %v2267, %v2332
  %v2403 = vmul.f32 %v2268, %v2332
  %v2404 = vmul.f32 %v2269, %v2332
  %v2405 = vmul.f32 %v2270, %v2332
  %v2406 = vmul.f32 %v2271, %v2332
  %v2407 = vmul.f32 %v2272, %v2332
  %v2408 = vmul.f32 %v2273, %v2332
  %v2409 = vmul.f32 %v2274, %v2332
  %v2410 = vmul.f32 %v2275, %v2332
  %v2411 = vmul.f32 %v2276, %v2332
  %v2412 = vmul.f32 %v2277, %v2332
  %v2413 = vmul.f32 %v2278, %v2332
  %v2414 = vmul.f32 %v2279, %v2332
  %v2415 = vmul.f32 %v2280, %v2332
  %v2416 = vmul.f32 %v2281, %v2332
  %v2417 = vmul.f32 %v2282, %v2332
  %v2418 = vmul.f32 %v2283, %v2332
  %v2419 = vmul.f32 %v2284, %v2332
  %v2420 = vmul.f32 %v2285, %v2332
  %v2421 = vmul.f32 %v2286, %v2332
  %v2422 = vmul.f32 %v2287, %v2332
  %v2423 = vmul.f32 %v2288, %v2332
  %v2424 = vmul.f32 %v2289, %v2332
  %v2425 = vmul.f32 %v2290, %v2332
  %v2426 = vmul.f32 %v2291, %v2332
  %v2427 = vmul.f32 %v2292, %v2332
  %v2428 = vmul.f32 %v2293, %v2332
  %v2429 = vmul.f32 %v2294, %v2332
  %v2430 = vmul.f32 %v2295, %v2332
  %v2431 = vmul.f32 %v2296, %v2332
  %v2432 = vmul.f32 %v2297, %v2332
  %v2433 = vmul.f32 %v2298, %v2332
  %v2434 = vmul.f32 %v2299, %v2332
  %v2435 = vmul.f32 %v2300, %v2332
  %v2436 = vmul.f32 %v2301, %v2332
  %v2437 = vmul.f32 %v2302, %v2332
  %v2438 = vmul.f32 %v2303, %v2332
  %v2439 = vmul.f32 %v2304, %v2332
  %v2440 = vmul.f32 %v2305, %v2332
  %v2441 = vmul.f32 %v2306, %v2332
  %v2442 = vmul.f32 %v2307, %v2332
  %v2443 = vmul.f32 %v2308, %v2332
  %v2444 = vmul.f32 %v2309, %v2332
  %v2445 = vmul.f32 %v2310, %v2332
  %v2446 = vmul.f32 %v2311, %v2332
  %v2447 = vmul.f32 %v2312, %v2332
  %v2448 = vmul.f32 %v2313, %v2332
  %v2449 = vmul.f32 %v2314, %v2332
  %v2450 = vmul.f32 %v2315, %v2332
  %v2451 = vmul.f32 %v2316, %v2332
  %v2452 = vmul.f32 %v2317, %v2332
  %v2453 = vmul.f32 %v2318, %v2332
  %v2454 = vmul.f32 %v2319, %v2332
  %v2455 = vmul.f32 %v2320, %v2332
  %v2456 = vmul.f32 %v2321, %v2332
  %v2457 = vmul.f32 %v2322, %v2332
  %v2458 = vmul.f32 %v2323, %v2332
  %v2459 = vmul.f32 %v2324, %v2332
  %v2460 = vmul.f32 %v2325, %v2332
  %v2461 = vmul.f32 %v2326, %v2332
  %v2462 = vsel %vm1461, %v2334, 0.0
  %2463 = vadd.xlane.f32.xlu0 %v2462
  %v2464 = vpop.xlane.xlu0 %2463
  %v2465 = vsel %vm1461, %v2335, 0.0
  %2466 = vadd.xlane.f32.xlu0 %v2465
  %v2467 = vpop.xlane.xlu0 %2466
  %v2468 = vsel %vm1461, %v2336, 0.0
  %2469 = vadd.xlane.f32.xlu0 %v2468
  %v2470 = vpop.xlane.xlu0 %2469
  %v2471 = vsel %vm1461, %v2337, 0.0
  %2472 = vadd.xlane.f32.xlu0 %v2471
  %v2473 = vpop.xlane.xlu0 %2472
  %v2474 = vsel %vm1461, %v2338, 0.0
  %2475 = vadd.xlane.f32.xlu0 %v2474
  %v2476 = vpop.xlane.xlu0 %2475
  %v2477 = vsel %vm1461, %v2339, 0.0
  %2478 = vadd.xlane.f32.xlu0 %v2477
  %v2479 = vpop.xlane.xlu0 %2478
  %v2480 = vsel %vm1461, %v2340, 0.0
  %2481 = vadd.xlane.f32.xlu0 %v2480
  %v2482 = vpop.xlane.xlu0 %2481
  %v2483 = vsel %vm1461, %v2341, 0.0
  %2484 = vadd.xlane.f32.xlu0 %v2483
  %v2485 = vpop.xlane.xlu0 %2484
  %v2486 = vsel %vm1461, %v2342, 0.0
  %2487 = vadd.xlane.f32.xlu0 %v2486
  %v2488 = vpop.xlane.xlu0 %2487
  %v2489 = vsel %vm1461, %v2343, 0.0
  %2490 = vadd.xlane.f32.xlu0 %v2489
  %v2491 = vpop.xlane.xlu0 %2490
  %v2492 = vsel %vm1461, %v2344, 0.0
  %2493 = vadd.xlane.f32.xlu0 %v2492
  %v2494 = vpop.xlane.xlu0 %2493
  %v2495 = vsel %vm1461, %v2345, 0.0
  %2496 = vadd.xlane.f32.xlu0 %v2495
  %v2497 = vpop.xlane.xlu0 %2496
  %v2498 = vsel %vm1461, %v2346, 0.0
  %2499 = vadd.xlane.f32.xlu0 %v2498
  %v2500 = vpop.xlane.xlu0 %2499
  %v2501 = vsel %vm1461, %v2347, 0.0
  %2502 = vadd.xlane.f32.xlu0 %v2501
  %v2503 = vpop.xlane.xlu0 %2502
  %v2504 = vsel %vm1461, %v2348, 0.0
  %2505 = vadd.xlane.f32.xlu0 %v2504
  %v2506 = vpop.xlane.xlu0 %2505
  %v2507 = vsel %vm1461, %v2349, 0.0
  %2508 = vadd.xlane.f32.xlu0 %v2507
  %v2509 = vpop.xlane.xlu0 %2508
  %v2510 = vsel %vm1461, %v2350, 0.0
  %2511 = vadd.xlane.f32.xlu0 %v2510
  %v2512 = vpop.xlane.xlu0 %2511
  %v2513 = vsel %vm1461, %v2351, 0.0
  %2514 = vadd.xlane.f32.xlu0 %v2513
  %v2515 = vpop.xlane.xlu0 %2514
  %v2516 = vsel %vm1461, %v2352, 0.0
  %2517 = vadd.xlane.f32.xlu0 %v2516
  %v2518 = vpop.xlane.xlu0 %2517
  %v2519 = vsel %vm1461, %v2353, 0.0
  %2520 = vadd.xlane.f32.xlu0 %v2519
  %v2521 = vpop.xlane.xlu0 %2520
  %v2522 = vsel %vm1461, %v2354, 0.0
  %2523 = vadd.xlane.f32.xlu0 %v2522
  %v2524 = vpop.xlane.xlu0 %2523
  %v2525 = vsel %vm1461, %v2355, 0.0
  %2526 = vadd.xlane.f32.xlu0 %v2525
  %v2527 = vpop.xlane.xlu0 %2526
  %v2528 = vsel %vm1461, %v2356, 0.0
  %2529 = vadd.xlane.f32.xlu0 %v2528
  %v2530 = vpop.xlane.xlu0 %2529
  %v2531 = vsel %vm1461, %v2357, 0.0
  %2532 = vadd.xlane.f32.xlu0 %v2531
  %v2533 = vpop.xlane.xlu0 %2532
  %v2534 = vsel %vm1461, %v2358, 0.0
  %2535 = vadd.xlane.f32.xlu0 %v2534
  %v2536 = vpop.xlane.xlu0 %2535
  %v2537 = vsel %vm1461, %v2359, 0.0
  %2538 = vadd.xlane.f32.xlu0 %v2537
  %v2539 = vpop.xlane.xlu0 %2538
  %v2540 = vsel %vm1461, %v2360, 0.0
  %2541 = vadd.xlane.f32.xlu0 %v2540
  %v2542 = vpop.xlane.xlu0 %2541
  %v2543 = vsel %vm1461, %v2361, 0.0
  %2544 = vadd.xlane.f32.xlu0 %v2543
  %v2545 = vpop.xlane.xlu0 %2544
  %v2546 = vsel %vm1461, %v2362, 0.0
  %2547 = vadd.xlane.f32.xlu0 %v2546
  %v2548 = vpop.xlane.xlu0 %2547
  %v2549 = vsel %vm1461, %v2363, 0.0
  %2550 = vadd.xlane.f32.xlu0 %v2549
  %v2551 = vpop.xlane.xlu0 %2550
  %v2552 = vsel %vm1461, %v2364, 0.0
  %2553 = vadd.xlane.f32.xlu0 %v2552
  %v2554 = vpop.xlane.xlu0 %2553
  %v2555 = vsel %vm1461, %v2365, 0.0
  %2556 = vadd.xlane.f32.xlu0 %v2555
  %v2557 = vpop.xlane.xlu0 %2556
  %v2558 = vsel %vm1461, %v2366, 0.0
  %2559 = vadd.xlane.f32.xlu0 %v2558
  %v2560 = vpop.xlane.xlu0 %2559
  %v2561 = vsel %vm1461, %v2367, 0.0
  %2562 = vadd.xlane.f32.xlu0 %v2561
  %v2563 = vpop.xlane.xlu0 %2562
  %v2564 = vsel %vm1461, %v2368, 0.0
  %2565 = vadd.xlane.f32.xlu0 %v2564
  %v2566 = vpop.xlane.xlu0 %2565
  %v2567 = vsel %vm1461, %v2369, 0.0
  %2568 = vadd.xlane.f32.xlu0 %v2567
  %v2569 = vpop.xlane.xlu0 %2568
  %v2570 = vsel %vm1461, %v2370, 0.0
  %2571 = vadd.xlane.f32.xlu0 %v2570
  %v2572 = vpop.xlane.xlu0 %2571
  %v2573 = vsel %vm1461, %v2371, 0.0
  %2574 = vadd.xlane.f32.xlu0 %v2573
  %v2575 = vpop.xlane.xlu0 %2574
  %v2576 = vsel %vm1461, %v2372, 0.0
  %2577 = vadd.xlane.f32.xlu0 %v2576
  %v2578 = vpop.xlane.xlu0 %2577
  %v2579 = vsel %vm1461, %v2373, 0.0
  %2580 = vadd.xlane.f32.xlu0 %v2579
  %v2581 = vpop.xlane.xlu0 %2580
  %v2582 = vsel %vm1461, %v2374, 0.0
  %2583 = vadd.xlane.f32.xlu0 %v2582
  %v2584 = vpop.xlane.xlu0 %2583
  %v2585 = vsel %vm1461, %v2375, 0.0
  %2586 = vadd.xlane.f32.xlu0 %v2585
  %v2587 = vpop.xlane.xlu0 %2586
  %v2588 = vsel %vm1461, %v2376, 0.0
  %2589 = vadd.xlane.f32.xlu0 %v2588
  %v2590 = vpop.xlane.xlu0 %2589
  %v2591 = vsel %vm1461, %v2377, 0.0
  %2592 = vadd.xlane.f32.xlu0 %v2591
  %v2593 = vpop.xlane.xlu0 %2592
  %v2594 = vsel %vm1461, %v2378, 0.0
  %2595 = vadd.xlane.f32.xlu0 %v2594
  %v2596 = vpop.xlane.xlu0 %2595
  %v2597 = vsel %vm1461, %v2379, 0.0
  %2598 = vadd.xlane.f32.xlu0 %v2597
  %v2599 = vpop.xlane.xlu0 %2598
  %v2600 = vsel %vm1461, %v2380, 0.0
  %2601 = vadd.xlane.f32.xlu0 %v2600
  %v2602 = vpop.xlane.xlu0 %2601
  %v2603 = vsel %vm1461, %v2381, 0.0
  %2604 = vadd.xlane.f32.xlu0 %v2603
  %v2605 = vpop.xlane.xlu0 %2604
  %v2606 = vsel %vm1461, %v2382, 0.0
  %2607 = vadd.xlane.f32.xlu0 %v2606
  %v2608 = vpop.xlane.xlu0 %2607
  %v2609 = vsel %vm1461, %v2383, 0.0
  %2610 = vadd.xlane.f32.xlu0 %v2609
  %v2611 = vpop.xlane.xlu0 %2610
  %v2612 = vsel %vm1461, %v2384, 0.0
  %2613 = vadd.xlane.f32.xlu0 %v2612
  %v2614 = vpop.xlane.xlu0 %2613
  %v2615 = vsel %vm1461, %v2385, 0.0
  %2616 = vadd.xlane.f32.xlu0 %v2615
  %v2617 = vpop.xlane.xlu0 %2616
  %v2618 = vsel %vm1461, %v2386, 0.0
  %2619 = vadd.xlane.f32.xlu0 %v2618
  %v2620 = vpop.xlane.xlu0 %2619
  %v2621 = vsel %vm1461, %v2387, 0.0
  %2622 = vadd.xlane.f32.xlu0 %v2621
  %v2623 = vpop.xlane.xlu0 %2622
  %v2624 = vsel %vm1461, %v2388, 0.0
  %2625 = vadd.xlane.f32.xlu0 %v2624
  %v2626 = vpop.xlane.xlu0 %2625
  %v2627 = vsel %vm1461, %v2389, 0.0
  %2628 = vadd.xlane.f32.xlu0 %v2627
  %v2629 = vpop.xlane.xlu0 %2628
  %v2630 = vsel %vm1461, %v2390, 0.0
  %2631 = vadd.xlane.f32.xlu0 %v2630
  %v2632 = vpop.xlane.xlu0 %2631
  %v2633 = vsel %vm1461, %v2391, 0.0
  %2634 = vadd.xlane.f32.xlu0 %v2633
  %v2635 = vpop.xlane.xlu0 %2634
  %v2636 = vsel %vm1461, %v2392, 0.0
  %2637 = vadd.xlane.f32.xlu0 %v2636
  %v2638 = vpop.xlane.xlu0 %2637
  %v2639 = vsel %vm1461, %v2393, 0.0
  %2640 = vadd.xlane.f32.xlu0 %v2639
  %v2641 = vpop.xlane.xlu0 %2640
  %v2642 = vsel %vm1461, %v2394, 0.0
  %2643 = vadd.xlane.f32.xlu0 %v2642
  %v2644 = vpop.xlane.xlu0 %2643
  %v2645 = vsel %vm1461, %v2395, 0.0
  %2646 = vadd.xlane.f32.xlu0 %v2645
  %v2647 = vpop.xlane.xlu0 %2646
  %v2648 = vsel %vm1461, %v2396, 0.0
  %2649 = vadd.xlane.f32.xlu0 %v2648
  %v2650 = vpop.xlane.xlu0 %2649
  %v2651 = vsel %vm1461, %v2397, 0.0
  %2652 = vadd.xlane.f32.xlu0 %v2651
  %v2653 = vpop.xlane.xlu0 %2652
  %v2654 = vsel %vm1461, %v2398, 0.0
  %2655 = vadd.xlane.f32.xlu0 %v2654
  %v2656 = vpop.xlane.xlu0 %2655
  %v2657 = vsel %vm1461, %v2399, 0.0
  %2658 = vadd.xlane.f32.xlu0 %v2657
  %v2659 = vpop.xlane.xlu0 %2658
  %v2660 = vsel %vm1461, %v2400, 0.0
  %2661 = vadd.xlane.f32.xlu0 %v2660
  %v2662 = vpop.xlane.xlu0 %2661
  %v2663 = vsel %vm1461, %v2401, 0.0
  %2664 = vadd.xlane.f32.xlu0 %v2663
  %v2665 = vpop.xlane.xlu0 %2664
  %v2666 = vsel %vm1461, %v2402, 0.0
  %2667 = vadd.xlane.f32.xlu0 %v2666
  %v2668 = vpop.xlane.xlu0 %2667
  %v2669 = vsel %vm1461, %v2403, 0.0
  %2670 = vadd.xlane.f32.xlu0 %v2669
  %v2671 = vpop.xlane.xlu0 %2670
  %v2672 = vsel %vm1461, %v2404, 0.0
  %2673 = vadd.xlane.f32.xlu0 %v2672
  %v2674 = vpop.xlane.xlu0 %2673
  %v2675 = vsel %vm1461, %v2405, 0.0
  %2676 = vadd.xlane.f32.xlu0 %v2675
  %v2677 = vpop.xlane.xlu0 %2676
  %v2678 = vsel %vm1461, %v2406, 0.0
  %2679 = vadd.xlane.f32.xlu0 %v2678
  %v2680 = vpop.xlane.xlu0 %2679
  %v2681 = vsel %vm1461, %v2407, 0.0
  %2682 = vadd.xlane.f32.xlu0 %v2681
  %v2683 = vpop.xlane.xlu0 %2682
  %v2684 = vsel %vm1461, %v2408, 0.0
  %2685 = vadd.xlane.f32.xlu0 %v2684
  %v2686 = vpop.xlane.xlu0 %2685
  %v2687 = vsel %vm1461, %v2409, 0.0
  %2688 = vadd.xlane.f32.xlu0 %v2687
  %v2689 = vpop.xlane.xlu0 %2688
  %v2690 = vsel %vm1461, %v2410, 0.0
  %2691 = vadd.xlane.f32.xlu0 %v2690
  %v2692 = vpop.xlane.xlu0 %2691
  %v2693 = vsel %vm1461, %v2411, 0.0
  %2694 = vadd.xlane.f32.xlu0 %v2693
  %v2695 = vpop.xlane.xlu0 %2694
  %v2696 = vsel %vm1461, %v2412, 0.0
  %2697 = vadd.xlane.f32.xlu0 %v2696
  %v2698 = vpop.xlane.xlu0 %2697
  %v2699 = vsel %vm1461, %v2413, 0.0
  %2700 = vadd.xlane.f32.xlu0 %v2699
  %v2701 = vpop.xlane.xlu0 %2700
  %v2702 = vsel %vm1461, %v2414, 0.0
  %2703 = vadd.xlane.f32.xlu0 %v2702
  %v2704 = vpop.xlane.xlu0 %2703
  %v2705 = vsel %vm1461, %v2415, 0.0
  %2706 = vadd.xlane.f32.xlu0 %v2705
  %v2707 = vpop.xlane.xlu0 %2706
  %v2708 = vsel %vm1461, %v2416, 0.0
  %2709 = vadd.xlane.f32.xlu0 %v2708
  %v2710 = vpop.xlane.xlu0 %2709
  %v2711 = vsel %vm1461, %v2417, 0.0
  %2712 = vadd.xlane.f32.xlu0 %v2711
  %v2713 = vpop.xlane.xlu0 %2712
  %v2714 = vsel %vm1461, %v2418, 0.0
  %2715 = vadd.xlane.f32.xlu0 %v2714
  %v2716 = vpop.xlane.xlu0 %2715
  %v2717 = vsel %vm1461, %v2419, 0.0
  %2718 = vadd.xlane.f32.xlu0 %v2717
  %v2719 = vpop.xlane.xlu0 %2718
  %v2720 = vsel %vm1461, %v2420, 0.0
  %2721 = vadd.xlane.f32.xlu0 %v2720
  %v2722 = vpop.xlane.xlu0 %2721
  %v2723 = vsel %vm1461, %v2421, 0.0
  %2724 = vadd.xlane.f32.xlu0 %v2723
  %v2725 = vpop.xlane.xlu0 %2724
  %v2726 = vsel %vm1461, %v2422, 0.0
  %2727 = vadd.xlane.f32.xlu0 %v2726
  %v2728 = vpop.xlane.xlu0 %2727
  %v2729 = vsel %vm1461, %v2423, 0.0
  %2730 = vadd.xlane.f32.xlu0 %v2729
  %v2731 = vpop.xlane.xlu0 %2730
  %v2732 = vsel %vm1461, %v2424, 0.0
  %2733 = vadd.xlane.f32.xlu0 %v2732
  %v2734 = vpop.xlane.xlu0 %2733
  %v2735 = vsel %vm1461, %v2425, 0.0
  %2736 = vadd.xlane.f32.xlu0 %v2735
  %v2737 = vpop.xlane.xlu0 %2736
  %v2738 = vsel %vm1461, %v2426, 0.0
  %2739 = vadd.xlane.f32.xlu0 %v2738
  %v2740 = vpop.xlane.xlu0 %2739
  %v2741 = vsel %vm1461, %v2427, 0.0
  %2742 = vadd.xlane.f32.xlu0 %v2741
  %v2743 = vpop.xlane.xlu0 %2742
  %v2744 = vsel %vm1461, %v2428, 0.0
  %2745 = vadd.xlane.f32.xlu0 %v2744
  %v2746 = vpop.xlane.xlu0 %2745
  %v2747 = vsel %vm1461, %v2429, 0.0
  %2748 = vadd.xlane.f32.xlu0 %v2747
  %v2749 = vpop.xlane.xlu0 %2748
  %v2750 = vsel %vm1461, %v2430, 0.0
  %2751 = vadd.xlane.f32.xlu0 %v2750
  %v2752 = vpop.xlane.xlu0 %2751
  %v2753 = vsel %vm1461, %v2431, 0.0
  %2754 = vadd.xlane.f32.xlu0 %v2753
  %v2755 = vpop.xlane.xlu0 %2754
  %v2756 = vsel %vm1461, %v2432, 0.0
  %2757 = vadd.xlane.f32.xlu0 %v2756
  %v2758 = vpop.xlane.xlu0 %2757
  %v2759 = vsel %vm1461, %v2433, 0.0
  %2760 = vadd.xlane.f32.xlu0 %v2759
  %v2761 = vpop.xlane.xlu0 %2760
  %v2762 = vsel %vm1461, %v2434, 0.0
  %2763 = vadd.xlane.f32.xlu0 %v2762
  %v2764 = vpop.xlane.xlu0 %2763
  %v2765 = vsel %vm1461, %v2435, 0.0
  %2766 = vadd.xlane.f32.xlu0 %v2765
  %v2767 = vpop.xlane.xlu0 %2766
  %v2768 = vsel %vm1461, %v2436, 0.0
  %2769 = vadd.xlane.f32.xlu0 %v2768
  %v2770 = vpop.xlane.xlu0 %2769
  %v2771 = vsel %vm1461, %v2437, 0.0
  %2772 = vadd.xlane.f32.xlu0 %v2771
  %v2773 = vpop.xlane.xlu0 %2772
  %v2774 = vsel %vm1461, %v2438, 0.0
  %2775 = vadd.xlane.f32.xlu0 %v2774
  %v2776 = vpop.xlane.xlu0 %2775
  %v2777 = vsel %vm1461, %v2439, 0.0
  %2778 = vadd.xlane.f32.xlu0 %v2777
  %v2779 = vpop.xlane.xlu0 %2778
  %v2780 = vsel %vm1461, %v2440, 0.0
  %2781 = vadd.xlane.f32.xlu0 %v2780
  %v2782 = vpop.xlane.xlu0 %2781
  %v2783 = vsel %vm1461, %v2441, 0.0
  %2784 = vadd.xlane.f32.xlu0 %v2783
  %v2785 = vpop.xlane.xlu0 %2784
  %v2786 = vsel %vm1461, %v2442, 0.0
  %2787 = vadd.xlane.f32.xlu0 %v2786
  %v2788 = vpop.xlane.xlu0 %2787
  %v2789 = vsel %vm1461, %v2443, 0.0
  %2790 = vadd.xlane.f32.xlu0 %v2789
  %v2791 = vpop.xlane.xlu0 %2790
  %v2792 = vsel %vm1461, %v2444, 0.0
  %2793 = vadd.xlane.f32.xlu0 %v2792
  %v2794 = vpop.xlane.xlu0 %2793
  %v2795 = vsel %vm1461, %v2445, 0.0
  %2796 = vadd.xlane.f32.xlu0 %v2795
  %v2797 = vpop.xlane.xlu0 %2796
  %v2798 = vsel %vm1461, %v2446, 0.0
  %2799 = vadd.xlane.f32.xlu0 %v2798
  %v2800 = vpop.xlane.xlu0 %2799
  %v2801 = vsel %vm1461, %v2447, 0.0
  %2802 = vadd.xlane.f32.xlu0 %v2801
  %v2803 = vpop.xlane.xlu0 %2802
  %v2804 = vsel %vm1461, %v2448, 0.0
  %2805 = vadd.xlane.f32.xlu0 %v2804
  %v2806 = vpop.xlane.xlu0 %2805
  %v2807 = vsel %vm1461, %v2449, 0.0
  %2808 = vadd.xlane.f32.xlu0 %v2807
  %v2809 = vpop.xlane.xlu0 %2808
  %v2810 = vsel %vm1461, %v2450, 0.0
  %2811 = vadd.xlane.f32.xlu0 %v2810
  %v2812 = vpop.xlane.xlu0 %2811
  %v2813 = vsel %vm1461, %v2451, 0.0
  %2814 = vadd.xlane.f32.xlu0 %v2813
  %v2815 = vpop.xlane.xlu0 %2814
  %v2816 = vsel %vm1461, %v2452, 0.0
  %2817 = vadd.xlane.f32.xlu0 %v2816
  %v2818 = vpop.xlane.xlu0 %2817
  %v2819 = vsel %vm1461, %v2453, 0.0
  %2820 = vadd.xlane.f32.xlu0 %v2819
  %v2821 = vpop.xlane.xlu0 %2820
  %v2822 = vsel %vm1461, %v2454, 0.0
  %2823 = vadd.xlane.f32.xlu0 %v2822
  %v2824 = vpop.xlane.xlu0 %2823
  %v2825 = vsel %vm1461, %v2455, 0.0
  %2826 = vadd.xlane.f32.xlu0 %v2825
  %v2827 = vpop.xlane.xlu0 %2826
  %v2828 = vsel %vm1461, %v2456, 0.0
  %2829 = vadd.xlane.f32.xlu0 %v2828
  %v2830 = vpop.xlane.xlu0 %2829
  %v2831 = vsel %vm1461, %v2457, 0.0
  %2832 = vadd.xlane.f32.xlu0 %v2831
  %v2833 = vpop.xlane.xlu0 %2832
  %v2834 = vsel %vm1461, %v2458, 0.0
  %2835 = vadd.xlane.f32.xlu0 %v2834
  %v2836 = vpop.xlane.xlu0 %2835
  %v2837 = vsel %vm1461, %v2459, 0.0
  %2838 = vadd.xlane.f32.xlu0 %v2837
  %v2839 = vpop.xlane.xlu0 %2838
  %v2840 = vsel %vm1461, %v2460, 0.0
  %2841 = vadd.xlane.f32.xlu0 %v2840
  %v2842 = vpop.xlane.xlu0 %2841
  %v2843 = vsel %vm1461, %v2461, 0.0
  %2844 = vadd.xlane.f32.xlu0 %v2843
  %v2845 = vpop.xlane.xlu0 %2844
  %v2846 = vld [vmem:[#allocation2] sm:$0x1]
  %v2848 = vlaneseq
  %v2849 = vshrl.u32 %v2848, 7
  %v2850 = vsub.s32 0, %v2849
  %v2851 = vrot.slane %v2846, %v2850
  %v2853 = vadd.f32 %v2464, %v2851
  %v2854 = vadd.f32 %v2467, %v2851
  %v2855 = vadd.f32 %v2470, %v2851
  %v2856 = vadd.f32 %v2473, %v2851
  %v2857 = vadd.f32 %v2476, %v2851
  %v2858 = vadd.f32 %v2479, %v2851
  %v2859 = vadd.f32 %v2482, %v2851
  %v2860 = vadd.f32 %v2485, %v2851
  %v2861 = vadd.f32 %v2488, %v2851
  %v2862 = vadd.f32 %v2491, %v2851
  %v2863 = vadd.f32 %v2494, %v2851
  %v2864 = vadd.f32 %v2497, %v2851
  %v2865 = vadd.f32 %v2500, %v2851
  %v2866 = vadd.f32 %v2503, %v2851
  %v2867 = vadd.f32 %v2506, %v2851
  %v2868 = vadd.f32 %v2509, %v2851
  %v2869 = vadd.f32 %v2512, %v2851
  %v2870 = vadd.f32 %v2515, %v2851
  %v2871 = vadd.f32 %v2518, %v2851
  %v2872 = vadd.f32 %v2521, %v2851
  %v2873 = vadd.f32 %v2524, %v2851
  %v2874 = vadd.f32 %v2527, %v2851
  %v2875 = vadd.f32 %v2530, %v2851
  %v2876 = vadd.f32 %v2533, %v2851
  %v2877 = vadd.f32 %v2536, %v2851
  %v2878 = vadd.f32 %v2539, %v2851
  %v2879 = vadd.f32 %v2542, %v2851
  %v2880 = vadd.f32 %v2545, %v2851
  %v2881 = vadd.f32 %v2548, %v2851
  %v2882 = vadd.f32 %v2551, %v2851
  %v2883 = vadd.f32 %v2554, %v2851
  %v2884 = vadd.f32 %v2557, %v2851
  %v2885 = vadd.f32 %v2560, %v2851
  %v2886 = vadd.f32 %v2563, %v2851
  %v2887 = vadd.f32 %v2566, %v2851
  %v2888 = vadd.f32 %v2569, %v2851
  %v2889 = vadd.f32 %v2572, %v2851
  %v2890 = vadd.f32 %v2575, %v2851
  %v2891 = vadd.f32 %v2578, %v2851
  %v2892 = vadd.f32 %v2581, %v2851
  %v2893 = vadd.f32 %v2584, %v2851
  %v2894 = vadd.f32 %v2587, %v2851
  %v2895 = vadd.f32 %v2590, %v2851
  %v2896 = vadd.f32 %v2593, %v2851
  %v2897 = vadd.f32 %v2596, %v2851
  %v2898 = vadd.f32 %v2599, %v2851
  %v2899 = vadd.f32 %v2602, %v2851
  %v2900 = vadd.f32 %v2605, %v2851
  %v2901 = vadd.f32 %v2608, %v2851
  %v2902 = vadd.f32 %v2611, %v2851
  %v2903 = vadd.f32 %v2614, %v2851
  %v2904 = vadd.f32 %v2617, %v2851
  %v2905 = vadd.f32 %v2620, %v2851
  %v2906 = vadd.f32 %v2623, %v2851
  %v2907 = vadd.f32 %v2626, %v2851
  %v2908 = vadd.f32 %v2629, %v2851
  %v2909 = vadd.f32 %v2632, %v2851
  %v2910 = vadd.f32 %v2635, %v2851
  %v2911 = vadd.f32 %v2638, %v2851
  %v2912 = vadd.f32 %v2641, %v2851
  %v2913 = vadd.f32 %v2644, %v2851
  %v2914 = vadd.f32 %v2647, %v2851
  %v2915 = vadd.f32 %v2650, %v2851
  %v2916 = vadd.f32 %v2653, %v2851
  %v2917 = vadd.f32 %v2656, %v2851
  %v2918 = vadd.f32 %v2659, %v2851
  %v2919 = vadd.f32 %v2662, %v2851
  %v2920 = vadd.f32 %v2665, %v2851
  %v2921 = vadd.f32 %v2668, %v2851
  %v2922 = vadd.f32 %v2671, %v2851
  %v2923 = vadd.f32 %v2674, %v2851
  %v2924 = vadd.f32 %v2677, %v2851
  %v2925 = vadd.f32 %v2680, %v2851
  %v2926 = vadd.f32 %v2683, %v2851
  %v2927 = vadd.f32 %v2686, %v2851
  %v2928 = vadd.f32 %v2689, %v2851
  %v2929 = vadd.f32 %v2692, %v2851
  %v2930 = vadd.f32 %v2695, %v2851
  %v2931 = vadd.f32 %v2698, %v2851
  %v2932 = vadd.f32 %v2701, %v2851
  %v2933 = vadd.f32 %v2704, %v2851
  %v2934 = vadd.f32 %v2707, %v2851
  %v2935 = vadd.f32 %v2710, %v2851
  %v2936 = vadd.f32 %v2713, %v2851
  %v2937 = vadd.f32 %v2716, %v2851
  %v2938 = vadd.f32 %v2719, %v2851
  %v2939 = vadd.f32 %v2722, %v2851
  %v2940 = vadd.f32 %v2725, %v2851
  %v2941 = vadd.f32 %v2728, %v2851
  %v2942 = vadd.f32 %v2731, %v2851
  %v2943 = vadd.f32 %v2734, %v2851
  %v2944 = vadd.f32 %v2737, %v2851
  %v2945 = vadd.f32 %v2740, %v2851
  %v2946 = vadd.f32 %v2743, %v2851
  %v2947 = vadd.f32 %v2746, %v2851
  %v2948 = vadd.f32 %v2749, %v2851
  %v2949 = vadd.f32 %v2752, %v2851
  %v2950 = vadd.f32 %v2755, %v2851
  %v2951 = vadd.f32 %v2758, %v2851
  %v2952 = vadd.f32 %v2761, %v2851
  %v2953 = vadd.f32 %v2764, %v2851
  %v2954 = vadd.f32 %v2767, %v2851
  %v2955 = vadd.f32 %v2770, %v2851
  %v2956 = vadd.f32 %v2773, %v2851
  %v2957 = vadd.f32 %v2776, %v2851
  %v2958 = vadd.f32 %v2779, %v2851
  %v2959 = vadd.f32 %v2782, %v2851
  %v2960 = vadd.f32 %v2785, %v2851
  %v2961 = vadd.f32 %v2788, %v2851
  %v2962 = vadd.f32 %v2791, %v2851
  %v2963 = vadd.f32 %v2794, %v2851
  %v2964 = vadd.f32 %v2797, %v2851
  %v2965 = vadd.f32 %v2800, %v2851
  %v2966 = vadd.f32 %v2803, %v2851
  %v2967 = vadd.f32 %v2806, %v2851
  %v2968 = vadd.f32 %v2809, %v2851
  %v2969 = vadd.f32 %v2812, %v2851
  %v2970 = vadd.f32 %v2815, %v2851
  %v2971 = vadd.f32 %v2818, %v2851
  %v2972 = vadd.f32 %v2821, %v2851
  %v2973 = vadd.f32 %v2824, %v2851
  %v2974 = vadd.f32 %v2827, %v2851
  %v2975 = vadd.f32 %v2830, %v2851
  %v2976 = vadd.f32 %v2833, %v2851
  %v2977 = vadd.f32 %v2836, %v2851
  %v2978 = vadd.f32 %v2839, %v2851
  %v2979 = vadd.f32 %v2842, %v2851
  %v2980 = vadd.f32 %v2845, %v2851
  %vm2981 = vcmask 7168
  %2982 = vst.msk [vmem:[%s7] sm:$0xff] %vm2981, %v2853
  %2983 = vst.msk [vmem:[%s7 + $0x8] sm:$0xff] %vm2981, %v2854
  %2984 = vst.msk [vmem:[%s7 + $0x10] sm:$0xff] %vm2981, %v2855
  %2985 = vst.msk [vmem:[%s7 + $0x18] sm:$0xff] %vm2981, %v2856
  %2986 = vst.msk [vmem:[%s7 + $0x20] sm:$0xff] %vm2981, %v2857
  %2987 = vst.msk [vmem:[%s7 + $0x28] sm:$0xff] %vm2981, %v2858
  %2988 = vst.msk [vmem:[%s7 + $0x30] sm:$0xff] %vm2981, %v2859
  %2989 = vst.msk [vmem:[%s7 + $0x38] sm:$0xff] %vm2981, %v2860
  %2990 = vst.msk [vmem:[%s7 + $0x40] sm:$0xff] %vm2981, %v2861
  %2991 = vst.msk [vmem:[%s7 + $0x48] sm:$0xff] %vm2981, %v2862
  %2992 = vst.msk [vmem:[%s7 + $0x50] sm:$0xff] %vm2981, %v2863
  %2993 = vst.msk [vmem:[%s7 + $0x58] sm:$0xff] %vm2981, %v2864
  %2994 = vst.msk [vmem:[%s7 + $0x60] sm:$0xff] %vm2981, %v2865
  %2995 = vst.msk [vmem:[%s7 + $0x68] sm:$0xff] %vm2981, %v2866
  %2996 = vst.msk [vmem:[%s7 + $0x70] sm:$0xff] %vm2981, %v2867
  %2997 = vst.msk [vmem:[%s7 + $0x78] sm:$0xff] %vm2981, %v2868
  %2998 = vst.msk [vmem:[%s7 + $0x80] sm:$0xff] %vm2981, %v2869
  %2999 = vst.msk [vmem:[%s7 + $0x88] sm:$0xff] %vm2981, %v2870
  %3000 = vst.msk [vmem:[%s7 + $0x90] sm:$0xff] %vm2981, %v2871
  %3001 = vst.msk [vmem:[%s7 + $0x98] sm:$0xff] %vm2981, %v2872
  %3002 = vst.msk [vmem:[%s7 + $0xa0] sm:$0xff] %vm2981, %v2873
  %3003 = vst.msk [vmem:[%s7 + $0xa8] sm:$0xff] %vm2981, %v2874
  %3004 = vst.msk [vmem:[%s7 + $0xb0] sm:$0xff] %vm2981, %v2875
  %3005 = vst.msk [vmem:[%s7 + $0xb8] sm:$0xff] %vm2981, %v2876
  %3006 = vst.msk [vmem:[%s7 + $0xc0] sm:$0xff] %vm2981, %v2877
  %3007 = vst.msk [vmem:[%s7 + $0xc8] sm:$0xff] %vm2981, %v2878
  %3008 = vst.msk [vmem:[%s7 + $0xd0] sm:$0xff] %vm2981, %v2879
  %3009 = vst.msk [vmem:[%s7 + $0xd8] sm:$0xff] %vm2981, %v2880
  %3010 = vst.msk [vmem:[%s7 + $0xe0] sm:$0xff] %vm2981, %v2881
  %3011 = vst.msk [vmem:[%s7 + $0xe8] sm:$0xff] %vm2981, %v2882
  %3012 = vst.msk [vmem:[%s7 + $0xf0] sm:$0xff] %vm2981, %v2883
  %3013 = vst.msk [vmem:[%s7 + $0xf8] sm:$0xff] %vm2981, %v2884
  %3014 = vst.msk [vmem:[%s7 + $0x100] sm:$0xff] %vm2981, %v2885
  %3015 = vst.msk [vmem:[%s7 + $0x108] sm:$0xff] %vm2981, %v2886
  %3016 = vst.msk [vmem:[%s7 + $0x110] sm:$0xff] %vm2981, %v2887
  %3017 = vst.msk [vmem:[%s7 + $0x118] sm:$0xff] %vm2981, %v2888
  %3018 = vst.msk [vmem:[%s7 + $0x120] sm:$0xff] %vm2981, %v2889
  %3019 = vst.msk [vmem:[%s7 + $0x128] sm:$0xff] %vm2981, %v2890
  %3020 = vst.msk [vmem:[%s7 + $0x130] sm:$0xff] %vm2981, %v2891
  %3021 = vst.msk [vmem:[%s7 + $0x138] sm:$0xff] %vm2981, %v2892
  %3022 = vst.msk [vmem:[%s7 + $0x140] sm:$0xff] %vm2981, %v2893
  %3023 = vst.msk [vmem:[%s7 + $0x148] sm:$0xff] %vm2981, %v2894
  %3024 = vst.msk [vmem:[%s7 + $0x150] sm:$0xff] %vm2981, %v2895
  %3025 = vst.msk [vmem:[%s7 + $0x158] sm:$0xff] %vm2981, %v2896
  %3026 = vst.msk [vmem:[%s7 + $0x160] sm:$0xff] %vm2981, %v2897
  %3027 = vst.msk [vmem:[%s7 + $0x168] sm:$0xff] %vm2981, %v2898
  %3028 = vst.msk [vmem:[%s7 + $0x170] sm:$0xff] %vm2981, %v2899
  %3029 = vst.msk [vmem:[%s7 + $0x178] sm:$0xff] %vm2981, %v2900
  %3030 = vst.msk [vmem:[%s7 + $0x180] sm:$0xff] %vm2981, %v2901
  %3031 = vst.msk [vmem:[%s7 + $0x188] sm:$0xff] %vm2981, %v2902
  %3032 = vst.msk [vmem:[%s7 + $0x190] sm:$0xff] %vm2981, %v2903
  %3033 = vst.msk [vmem:[%s7 + $0x198] sm:$0xff] %vm2981, %v2904
  %3034 = vst.msk [vmem:[%s7 + $0x1a0] sm:$0xff] %vm2981, %v2905
  %3035 = vst.msk [vmem:[%s7 + $0x1a8] sm:$0xff] %vm2981, %v2906
  %3036 = vst.msk [vmem:[%s7 + $0x1b0] sm:$0xff] %vm2981, %v2907
  %3037 = vst.msk [vmem:[%s7 + $0x1b8] sm:$0xff] %vm2981, %v2908
  %3038 = vst.msk [vmem:[%s7 + $0x1c0] sm:$0xff] %vm2981, %v2909
  %3039 = vst.msk [vmem:[%s7 + $0x1c8] sm:$0xff] %vm2981, %v2910
  %3040 = vst.msk [vmem:[%s7 + $0x1d0] sm:$0xff] %vm2981, %v2911
  %3041 = vst.msk [vmem:[%s7 + $0x1d8] sm:$0xff] %vm2981, %v2912
  %3042 = vst.msk [vmem:[%s7 + $0x1e0] sm:$0xff] %vm2981, %v2913
  %3043 = vst.msk [vmem:[%s7 + $0x1e8] sm:$0xff] %vm2981, %v2914
  %3044 = vst.msk [vmem:[%s7 + $0x1f0] sm:$0xff] %vm2981, %v2915
  %3045 = vst.msk [vmem:[%s7 + $0x1f8] sm:$0xff] %vm2981, %v2916
  %3046 = vst.msk [vmem:[%s7 + $0x200] sm:$0xff] %vm2981, %v2917
  %3047 = vst.msk [vmem:[%s7 + $0x208] sm:$0xff] %vm2981, %v2918
  %3048 = vst.msk [vmem:[%s7 + $0x210] sm:$0xff] %vm2981, %v2919
  %3049 = vst.msk [vmem:[%s7 + $0x218] sm:$0xff] %vm2981, %v2920
  %3050 = vst.msk [vmem:[%s7 + $0x220] sm:$0xff] %vm2981, %v2921
  %3051 = vst.msk [vmem:[%s7 + $0x228] sm:$0xff] %vm2981, %v2922
  %3052 = vst.msk [vmem:[%s7 + $0x230] sm:$0xff] %vm2981, %v2923
  %3053 = vst.msk [vmem:[%s7 + $0x238] sm:$0xff] %vm2981, %v2924
  %3054 = vst.msk [vmem:[%s7 + $0x240] sm:$0xff] %vm2981, %v2925
  %3055 = vst.msk [vmem:[%s7 + $0x248] sm:$0xff] %vm2981, %v2926
  %3056 = vst.msk [vmem:[%s7 + $0x250] sm:$0xff] %vm2981, %v2927
  %3057 = vst.msk [vmem:[%s7 + $0x258] sm:$0xff] %vm2981, %v2928
  %3058 = vst.msk [vmem:[%s7 + $0x260] sm:$0xff] %vm2981, %v2929
  %3059 = vst.msk [vmem:[%s7 + $0x268] sm:$0xff] %vm2981, %v2930
  %3060 = vst.msk [vmem:[%s7 + $0x270] sm:$0xff] %vm2981, %v2931
  %3061 = vst.msk [vmem:[%s7 + $0x278] sm:$0xff] %vm2981, %v2932
  %3062 = vst.msk [vmem:[%s7 + $0x280] sm:$0xff] %vm2981, %v2933
  %3063 = vst.msk [vmem:[%s7 + $0x288] sm:$0xff] %vm2981, %v2934
  %3064 = vst.msk [vmem:[%s7 + $0x290] sm:$0xff] %vm2981, %v2935
  %3065 = vst.msk [vmem:[%s7 + $0x298] sm:$0xff] %vm2981, %v2936
  %3066 = vst.msk [vmem:[%s7 + $0x2a0] sm:$0xff] %vm2981, %v2937
  %3067 = vst.msk [vmem:[%s7 + $0x2a8] sm:$0xff] %vm2981, %v2938
  %3068 = vst.msk [vmem:[%s7 + $0x2b0] sm:$0xff] %vm2981, %v2939
  %3069 = vst.msk [vmem:[%s7 + $0x2b8] sm:$0xff] %vm2981, %v2940
  %3070 = vst.msk [vmem:[%s7 + $0x2c0] sm:$0xff] %vm2981, %v2941
  %3071 = vst.msk [vmem:[%s7 + $0x2c8] sm:$0xff] %vm2981, %v2942
  %3072 = vst.msk [vmem:[%s7 + $0x2d0] sm:$0xff] %vm2981, %v2943
  %3073 = vst.msk [vmem:[%s7 + $0x2d8] sm:$0xff] %vm2981, %v2944
  %3074 = vst.msk [vmem:[%s7 + $0x2e0] sm:$0xff] %vm2981, %v2945
  %3075 = vst.msk [vmem:[%s7 + $0x2e8] sm:$0xff] %vm2981, %v2946
  %3076 = vst.msk [vmem:[%s7 + $0x2f0] sm:$0xff] %vm2981, %v2947
  %3077 = vst.msk [vmem:[%s7 + $0x2f8] sm:$0xff] %vm2981, %v2948
  %3078 = vst.msk [vmem:[%s7 + $0x300] sm:$0xff] %vm2981, %v2949
  %3079 = vst.msk [vmem:[%s7 + $0x308] sm:$0xff] %vm2981, %v2950
  %3080 = vst.msk [vmem:[%s7 + $0x310] sm:$0xff] %vm2981, %v2951
  %3081 = vst.msk [vmem:[%s7 + $0x318] sm:$0xff] %vm2981, %v2952
  %3082 = vst.msk [vmem:[%s7 + $0x320] sm:$0xff] %vm2981, %v2953
  %3083 = vst.msk [vmem:[%s7 + $0x328] sm:$0xff] %vm2981, %v2954
  %3084 = vst.msk [vmem:[%s7 + $0x330] sm:$0xff] %vm2981, %v2955
  %3085 = vst.msk [vmem:[%s7 + $0x338] sm:$0xff] %vm2981, %v2956
  %3086 = vst.msk [vmem:[%s7 + $0x340] sm:$0xff] %vm2981, %v2957
  %3087 = vst.msk [vmem:[%s7 + $0x348] sm:$0xff] %vm2981, %v2958
  %3088 = vst.msk [vmem:[%s7 + $0x350] sm:$0xff] %vm2981, %v2959
  %3089 = vst.msk [vmem:[%s7 + $0x358] sm:$0xff] %vm2981, %v2960
  %3090 = vst.msk [vmem:[%s7 + $0x360] sm:$0xff] %vm2981, %v2961
  %3091 = vst.msk [vmem:[%s7 + $0x368] sm:$0xff] %vm2981, %v2962
  %3092 = vst.msk [vmem:[%s7 + $0x370] sm:$0xff] %vm2981, %v2963
  %3093 = vst.msk [vmem:[%s7 + $0x378] sm:$0xff] %vm2981, %v2964
  %3094 = vst.msk [vmem:[%s7 + $0x380] sm:$0xff] %vm2981, %v2965
  %3095 = vst.msk [vmem:[%s7 + $0x388] sm:$0xff] %vm2981, %v2966
  %3096 = vst.msk [vmem:[%s7 + $0x390] sm:$0xff] %vm2981, %v2967
  %3097 = vst.msk [vmem:[%s7 + $0x398] sm:$0xff] %vm2981, %v2968
  %3098 = vst.msk [vmem:[%s7 + $0x3a0] sm:$0xff] %vm2981, %v2969
  %3099 = vst.msk [vmem:[%s7 + $0x3a8] sm:$0xff] %vm2981, %v2970
  %3100 = vst.msk [vmem:[%s7 + $0x3b0] sm:$0xff] %vm2981, %v2971
  %3101 = vst.msk [vmem:[%s7 + $0x3b8] sm:$0xff] %vm2981, %v2972
  %3102 = vst.msk [vmem:[%s7 + $0x3c0] sm:$0xff] %vm2981, %v2973
  %3103 = vst.msk [vmem:[%s7 + $0x3c8] sm:$0xff] %vm2981, %v2974
  %3104 = vst.msk [vmem:[%s7 + $0x3d0] sm:$0xff] %vm2981, %v2975
  %3105 = vst.msk [vmem:[%s7 + $0x3d8] sm:$0xff] %vm2981, %v2976
  %3106 = vst.msk [vmem:[%s7 + $0x3e0] sm:$0xff] %vm2981, %v2977
  %3107 = vst.msk [vmem:[%s7 + $0x3e8] sm:$0xff] %vm2981, %v2978
  %3108 = vst.msk [vmem:[%s7 + $0x3f0] sm:$0xff] %vm2981, %v2979
  %3109 = vst.msk [vmem:[%s7 + $0x3f8] sm:$0xff] %vm2981, %v2980
  // Predicated region
  $region30: #{tpu_custom_call.1} parent=0 // pred_check
    _
  $region31: #{tpu_custom_call.1} parent=0 // pred_check_branch
    %3111 = sbr.rel (0) target = $region33
  $region32: #{tpu_custom_call.1} parent=0 // pred_region
    _
  $region33: #{tpu_custom_call.1} parent=0 // pred_fallthru
    _
  // Predicated region
  $region34: #{tpu_custom_call.1} parent=0 // pred_check
    _
  $region35: #{tpu_custom_call.1} parent=0 // pred_check_branch
    %3113 = sbr.rel (0) target = $region37
  $region36: #{tpu_custom_call.1} parent=0 // pred_region
    _
  $region37: #{tpu_custom_call.1} parent=0 // pred_fallthru
    _

</llo_original>
